<compile_context>
chip_gen: v6e
topology: v6e:2x2x1
jax: 0.10.0
libtpu: 0.0.40
codegen_flags: <defaults>
</compile_context>

<pallas_src>
import jax
import jax.numpy as jnp
from jax.experimental import pallas as pl
from jax.experimental.pallas import tpu as pltpu


def _mlp_kernel(x_ref, w1_ref, b1_ref, w2_ref, b2_ref, w3_ref, b3_ref, o_ref):
    """Fused 3-layer MLP for one batch tile of tm rows (bf16 MXU, f32 acc)."""
    x = x_ref[...]                                            # (tm, D) bf16

    h1 = jnp.dot(x, w1_ref[...], preferred_element_type=jnp.float32)
    h1 = jnp.maximum(h1 + b1_ref[...], 0.0)                   # (tm, H1) f32 ReLU
    # Dropout(0.3) is identity at inference time.
    h1 = h1.astype(jnp.bfloat16)

    h2 = jnp.dot(h1, w2_ref[...], preferred_element_type=jnp.float32)
    h2 = jnp.maximum(h2 + b2_ref[...], 0.0)                   # (tm, H2) f32 ReLU
    h2 = h2.astype(jnp.bfloat16)

    # Final layer: w3 is (1, H2) (torch layout).  Contract on H2 of both
    # operands so the MXU result is (1, tm) -- lane-dense stores into the
    # (1, tm) output block.
    logits = jax.lax.dot_general(
        w3_ref[...], h2,
        dimension_numbers=(((1,), (1,)), ((), ())),
        preferred_element_type=jnp.float32)                   # (1, tm)
    o_ref[...] = (logits + b3_ref[...]).astype(o_ref.dtype)


def _choose_tm(B, tm_max):
    """Pick the batch tile: multiple of 128, <= tm_max, and >=2 tiles when
    possible so both v7x TensorCores get work via the parallel grid axis."""
    B128 = ((B + 127) // 128) * 128
    if B128 <= 128:
        return 128
    if B128 <= 2 * tm_max:
        half = ((B128 // 2 + 127) // 128) * 128
        return min(tm_max, half)
    return tm_max


def baseline_classifier_forward(x, params, *, tm_max=1024):
    """x: [B, input_dim] -> [B] float32 (one logit per example)."""
    w1, b1, w2, b2, w3, b3 = params
    B, D = x.shape
    H1 = w1.shape[1]
    H2 = w2.shape[1]

    tm = _choose_tm(B, tm_max)
    n_tiles = pl.cdiv(B, tm)
    B_pad = n_tiles * tm

    # bf16 MXU operands; biases stay f32 (bias-add / ReLU in f32 inside kernel).
    x = x.astype(jnp.bfloat16)
    w1 = w1.astype(jnp.bfloat16)
    w2 = w2.astype(jnp.bfloat16)
    w3 = w3.astype(jnp.bfloat16)
    b1 = b1.astype(jnp.float32)
    b2 = b2.astype(jnp.float32)
    b3 = b3.astype(jnp.float32)

    # Small residual pad (< tm rows) so every tile is full; padded rows are
    # independent garbage-free zeros and get sliced off at the end.
    if B_pad != B:
        x = jnp.pad(x, ((0, B_pad - B), (0, 0)))

    flops = 2 * B_pad * (D * H1 + H1 * H2 + H2)
    bytes_accessed = (2 * (B_pad * D + D * H1 + H1 * H2 + H2)   # bf16 streams
                      + 4 * (H1 + H2 + 1 + B_pad))              # f32 biases + out
    cost = pl.CostEstimate(flops=flops, transcendentals=0,
                           bytes_accessed=bytes_accessed)

    # Rough scoped-VMEM need: double-buffered bf16 x tile + double-buffered
    # bf16 weights / f32 biases + live f32/bf16 activations + output block.
    vmem_bytes = (2 * 2 * tm * D                                   # x (bf16, 2 buf)
                  + 2 * 2 * (D * H1 + H1 * H2 + H2)                # weights (bf16, 2 buf)
                  + 2 * 4 * (H1 + H2 + 1)                          # biases (f32, 2 buf)
                  + 2 * 4 * tm                                     # out block (f32, 2 buf)
                  + tm * (H1 + H2) * 6)                            # activations f32+bf16
    vmem_limit = None
    if vmem_bytes > (16 << 20):          # only raise when the tile needs it
        try:
            cap = pltpu.get_tpu_info().vmem_capacity_bytes
        except Exception:
            cap = 64 << 20
        # Generation-aware ceiling: leave ~16 MiB headroom for compiler scratch
        # (~48 MiB usable on v7x, ~112 MiB on v5e/v6e).
        vmem_limit = min(int(vmem_bytes * 1.25), cap - (16 << 20))

    out = pl.pallas_call(
        _mlp_kernel,
        out_shape=jax.ShapeDtypeStruct((1, B_pad), jnp.float32),
        grid_spec=pltpu.PrefetchScalarGridSpec(
            num_scalar_prefetch=0,
            grid=(n_tiles,),
            in_specs=[
                pl.BlockSpec((tm, D), lambda i: (i, 0)),      # x tile (streamed)
                pl.BlockSpec((D, H1), lambda i: (0, 0)),      # W1 (resident)
                pl.BlockSpec((1, H1), lambda i: (0, 0)),      # b1
                pl.BlockSpec((H1, H2), lambda i: (0, 0)),     # W2 (resident)
                pl.BlockSpec((1, H2), lambda i: (0, 0)),      # b2
                pl.BlockSpec((1, H2), lambda i: (0, 0)),      # W3 (torch layout)
                pl.BlockSpec((1, 1), lambda i: (0, 0)),       # b3
            ],
            out_specs=pl.BlockSpec((1, tm), lambda i: (0, i)),  # lane-dense
        ),
        compiler_params=pltpu.CompilerParams(
            dimension_semantics=("parallel",),
            vmem_limit_bytes=vmem_limit),
        cost_estimate=cost,
    )(x, w1, b1, w2, b2, w3, b3)

    return out[0, :B]  # drop batch padding; squeeze(-1) semantics


def init_params(key, input_dim=768, hidden_dims=(256, 128)):
    """Deterministic PyTorch-style (uniform +/- 1/sqrt(fan_in)) init, f32.

    Hidden weights stored as [in, out] (torch weight.T); final weight kept in
    torch layout (1, H2).  The forward wrapper casts weights to bf16."""
    params = []
    prev = input_dim
    for hd in hidden_dims:
        key, kw, kb = jax.random.split(key, 3)
        bound = 1.0 / jnp.sqrt(prev)
        w = jax.random.uniform(kw, (prev, hd), jnp.float32, -bound, bound)
        b = jax.random.uniform(kb, (1, hd), jnp.float32, -bound, bound)
        params.extend([w, b])
        prev = hd
    key, kw, kb = jax.random.split(key, 3)
    bound = 1.0 / jnp.sqrt(prev)
    w3 = jax.random.uniform(kw, (1, prev), jnp.float32, -bound, bound)
    b3 = jax.random.uniform(kb, (1, 1), jnp.float32, -bound, bound)
    params.extend([w3, b3])
    return tuple(params)


def _reference_forward_f32(x, params):
    w1, b1, w2, b2, w3, b3 = params
    h1 = jnp.maximum(x @ w1 + b1, 0.0)
    h2 = jnp.maximum(h1 @ w2 + b2, 0.0)
    return (h2 @ w3.T + b3)[:, 0]


def _reference_forward_bf16(x, params):
    """Same bf16-operand / f32-accumulate recipe as the kernel (XLA path)."""
    w1, b1, w2, b2, w3, b3 = params
    bf = jnp.bfloat16
    h1 = jnp.dot(x.astype(bf), w1.astype(bf),
                 preferred_element_type=jnp.float32)
    h1 = jnp.maximum(h1 + b1, 0.0).astype(bf)
    h2 = jnp.dot(h1, w2.astype(bf), preferred_element_type=jnp.float32)
    h2 = jnp.maximum(h2 + b2, 0.0).astype(bf)
    logits = jnp.dot(h2, w3.astype(bf).T, preferred_element_type=jnp.float32)
    return (logits + b3)[:, 0]


if __name__ == "__main__":
    key = jax.random.PRNGKey(0)
    key, kx = jax.random.split(key)

    # B=200 exercises the adaptive tile: tm=128, 2 tiles (both v7x TCs busy),
    # only 56 rows of padding instead of 312.
    B, INPUT_DIM = 200, 768
    x = jax.random.normal(kx, (B, INPUT_DIM), dtype=jnp.float32)
    params = init_params(key, input_dim=INPUT_DIM, hidden_dims=(256, 128))

    out = baseline_classifier_forward(x, params)
    out = jax.block_until_ready(out)
    assert out.shape == (B,), out.shape

    # Tight check vs. a bf16-matched reference (same operand dtypes, f32 acc).
    ref_bf16 = _reference_forward_bf16(x, params)
    assert jnp.allclose(out, ref_bf16, atol=2e-3, rtol=2e-3), \
        "mismatch vs. bf16-matched reference"

    # Loose check vs. the pure-f32 reference (bf16 operand quantization).
    ref_f32 = _reference_forward_f32(x, params)
    assert jnp.allclose(out, ref_f32, atol=5e-2, rtol=5e-2), \
        "mismatch vs. f32 reference"

    print("KERNEL_OK")
</pallas_src>

<mosaic_0001>
module attributes {stable_mosaic.version = 11 : i64} {
  func.func @_mlp_kernel(%arg0: i32, %arg1: memref<128x768xbf16, #tpu.memory_space<vmem>>, %arg2: memref<768x256xbf16, #tpu.memory_space<vmem>>, %arg3: memref<1x256xf32, #tpu.memory_space<vmem>>, %arg4: memref<256x128xbf16, #tpu.memory_space<vmem>>, %arg5: memref<1x128xf32, #tpu.memory_space<vmem>>, %arg6: memref<1x128xbf16, #tpu.memory_space<vmem>>, %arg7: memref<1x1xf32, #tpu.memory_space<vmem>>, %arg8: memref<1x128xf32, #tpu.memory_space<vmem>>) attributes {dimension_semantics = [#tpu.dimension_semantics<parallel>], iteration_bounds = array<i64: 2>, scalar_prefetch = 0 : i64, scratch_operands = 0 : i64, tpu.core_type = #tpu.core_type<tc>, window_params = [{transform_indices = @transform_0, window_bounds = array<i64: 128, 768>}, {pipeline_mode = #tpu.pipeline_mode<synchronous>, transform_indices = @transform_1, window_bounds = array<i64: 768, 256>}, {pipeline_mode = #tpu.pipeline_mode<synchronous>, transform_indices = @transform_2, window_bounds = array<i64: 1, 256>}, {pipeline_mode = #tpu.pipeline_mode<synchronous>, transform_indices = @transform_3, window_bounds = array<i64: 256, 128>}, {pipeline_mode = #tpu.pipeline_mode<synchronous>, transform_indices = @transform_4, window_bounds = array<i64: 1, 128>}, {pipeline_mode = #tpu.pipeline_mode<synchronous>, transform_indices = @transform_5, window_bounds = array<i64: 1, 128>}, {pipeline_mode = #tpu.pipeline_mode<synchronous>, transform_indices = @transform_6, window_bounds = array<i64: 1, 1>}, {transform_indices = @transform_7, window_bounds = array<i64: 1, 128>}]} {
    %c0 = arith.constant 0 : index
    %c0_0 = arith.constant 0 : index
    %0 = vector.load %arg1[%c0, %c0_0] : memref<128x768xbf16, #tpu.memory_space<vmem>>, vector<128x768xbf16>
    %c0_1 = arith.constant 0 : index
    %c0_2 = arith.constant 0 : index
    %1 = vector.load %arg2[%c0_1, %c0_2] : memref<768x256xbf16, #tpu.memory_space<vmem>>, vector<768x256xbf16>
    %cst = arith.constant dense<0.000000e+00> : vector<128x256xf32>
    %2 = tpu.matmul %0, %1, %cst {dimension_numbers = #tpu.dot_dimension_numbers<[1], [0], [0], [1], [0, 0, 1, 1], [], []>} : vector<128x768xbf16>, vector<768x256xbf16>, vector<128x256xf32> -> vector<128x256xf32>
    %c0_3 = arith.constant 0 : index
    %c0_4 = arith.constant 0 : index
    %3 = vector.load %arg3[%c0_3, %c0_4] : memref<1x256xf32, #tpu.memory_space<vmem>>, vector<1x256xf32>
    %4 = vector.broadcast %3 : vector<1x256xf32> to vector<128x256xf32>
    %5 = arith.addf %2, %4 : vector<128x256xf32>
    %cst_5 = arith.constant 0.000000e+00 : f32
    %6 = vector.broadcast %cst_5 : f32 to vector<128x256xf32>
    %7 = arith.maximumf %5, %6 : vector<128x256xf32>
    %8 = arith.truncf %7 : vector<128x256xf32> to vector<128x256xbf16>
    %c0_6 = arith.constant 0 : index
    %c0_7 = arith.constant 0 : index
    %9 = vector.load %arg4[%c0_6, %c0_7] : memref<256x128xbf16, #tpu.memory_space<vmem>>, vector<256x128xbf16>
    %cst_8 = arith.constant dense<0.000000e+00> : vector<128x128xf32>
    %10 = tpu.matmul %8, %9, %cst_8 {dimension_numbers = #tpu.dot_dimension_numbers<[1], [0], [0], [1], [0, 0, 1, 1], [], []>} : vector<128x256xbf16>, vector<256x128xbf16>, vector<128x128xf32> -> vector<128x128xf32>
    %c0_9 = arith.constant 0 : index
    %c0_10 = arith.constant 0 : index
    %11 = vector.load %arg5[%c0_9, %c0_10] : memref<1x128xf32, #tpu.memory_space<vmem>>, vector<1x128xf32>
    %12 = vector.broadcast %11 : vector<1x128xf32> to vector<128x128xf32>
    %13 = arith.addf %10, %12 : vector<128x128xf32>
    %cst_11 = arith.constant 0.000000e+00 : f32
    %14 = vector.broadcast %cst_11 : f32 to vector<128x128xf32>
    %15 = arith.maximumf %13, %14 : vector<128x128xf32>
    %16 = arith.truncf %15 : vector<128x128xf32> to vector<128x128xbf16>
    %c0_12 = arith.constant 0 : index
    %c0_13 = arith.constant 0 : index
    %17 = vector.load %arg6[%c0_12, %c0_13] : memref<1x128xbf16, #tpu.memory_space<vmem>>, vector<1x128xbf16>
    %cst_14 = arith.constant dense<0.000000e+00> : vector<1x128xf32>
    %18 = tpu.matmul %17, %16, %cst_14 {dimension_numbers = #tpu.dot_dimension_numbers<[1], [1], [0], [0], [0, 0, 1, 0], [], []>} : vector<1x128xbf16>, vector<128x128xbf16>, vector<1x128xf32> -> vector<1x128xf32>
    %c0_15 = arith.constant 0 : index
    %c0_16 = arith.constant 0 : index
    %19 = vector.load %arg7[%c0_15, %c0_16] : memref<1x1xf32, #tpu.memory_space<vmem>>, vector<1x1xf32>
    %20 = vector.broadcast %19 : vector<1x1xf32> to vector<1x128xf32>
    %21 = arith.addf %18, %20 : vector<1x128xf32>
    %c0_17 = arith.constant 0 : index
    %c0_18 = arith.constant 0 : index
    %22 = vector.load %arg8[%c0_17, %c0_18] : memref<1x128xf32, #tpu.memory_space<vmem>>, vector<1x128xf32>
    tpu.vector_store %arg8[%c0_17, %c0_18], %21 {strides = array<i32>} : memref<1x128xf32, #tpu.memory_space<vmem>>, vector<1x128xf32>,
    return
  }
  func.func @transform_0(%arg0: i32) -> (i32, i32) {
    %c0_i32 = arith.constant 0 : i32
    %c0_i32_0 = arith.constant 0 : i32
    return %arg0, %c0_i32 : i32, i32
  }
  func.func @transform_1(%arg0: i32) -> (i32, i32) {
    %c0_i32 = arith.constant 0 : i32
    %c0_i32_0 = arith.constant 0 : i32
    %c0_i32_1 = arith.constant 0 : i32
    return %c0_i32, %c0_i32_0 : i32, i32
  }
  func.func @transform_2(%arg0: i32) -> (i32, i32) {
    %c0_i32 = arith.constant 0 : i32
    %c0_i32_0 = arith.constant 0 : i32
    %c0_i32_1 = arith.constant 0 : i32
    return %c0_i32, %c0_i32_0 : i32, i32
  }
  func.func @transform_3(%arg0: i32) -> (i32, i32) {
    %c0_i32 = arith.constant 0 : i32
    %c0_i32_0 = arith.constant 0 : i32
    %c0_i32_1 = arith.constant 0 : i32
    return %c0_i32, %c0_i32_0 : i32, i32
  }
  func.func @transform_4(%arg0: i32) -> (i32, i32) {
    %c0_i32 = arith.constant 0 : i32
    %c0_i32_0 = arith.constant 0 : i32
    %c0_i32_1 = arith.constant 0 : i32
    return %c0_i32, %c0_i32_0 : i32, i32
  }
  func.func @transform_5(%arg0: i32) -> (i32, i32) {
    %c0_i32 = arith.constant 0 : i32
    %c0_i32_0 = arith.constant 0 : i32
    %c0_i32_1 = arith.constant 0 : i32
    return %c0_i32, %c0_i32_0 : i32, i32
  }
  func.func @transform_6(%arg0: i32) -> (i32, i32) {
    %c0_i32 = arith.constant 0 : i32
    %c0_i32_0 = arith.constant 0 : i32
    %c0_i32_1 = arith.constant 0 : i32
    return %c0_i32, %c0_i32_0 : i32, i32
  }
  func.func @transform_7(%arg0: i32) -> (i32, i32) {
    %c0_i32 = arith.constant 0 : i32
    %c0_i32_0 = arith.constant 0 : i32
    return %c0_i32, %arg0 : i32, i32
  }
}

</mosaic_0001>

<llo_original>
// kernel: tpu_custom_call.1
$region0: #{tpu_custom_call.1}
  #allocation0 [shape = 'u32[]', space=smem, size = 0x4, offset = 0x4, fixed_abs, tag = 'smem constant byte address 0x4 - core index']
  #allocation1 [shape = 'u32[144,128]{1,0:T(1,128)}', space=vmem, size = 0x12000, scoped, tag = 'internal scratch']
  #allocation2 [shape = 'f32[1,1]{1,0:T(1,128)S(1)}', space=vmem, size = 0x200, scoped, tag = 'scoped memory for tpu_custom_call.1']
  %s0 = inlined_call_operand.hbm [shape: bf16[256,768], index: 0, kind: input, shape index: {}]
  %s1 = inlined_call_operand.hbm [shape: bf16[768,256], index: 1, kind: input, shape index: {}]
  %s2 = inlined_call_operand.vmem [shape: f32[1,256], index: 2, kind: input, shape index: {}]
  %s3 = inlined_call_operand.hbm [shape: bf16[256,128], index: 3, kind: input, shape index: {}]
  %s4 = inlined_call_operand.vmem [shape: f32[1,128], index: 4, kind: input, shape index: {}]
  %s5 = inlined_call_operand.vmem [shape: bf16[1,128], index: 5, kind: input, shape index: {}]
  %s6 = inlined_call_operand.<no memory space> [shape: f32[1,1], index: 6, kind: input, shape index: {}]
  %s7 = inlined_call_operand.hbm [shape: f32[1,256], index: 7, kind: output, shape index: {}]
  %s8 = sld [smem:[#allocation0]]
  $region73: #{tpu_custom_call.1} parent=0
    _
  %s10 = ssub.s32 1, %s8
  %s11 = scalar_select 0, %s10, %s8
  %v12 = vstv %s6
  %13 = vst [vmem:[#allocation2] sm:$0x1] %v12
  $region1: #{tpu_custom_call.1} parent=0
    #allocation3 [shape = 'u8[393216]{0}', space=vmem, size = 0x60000, scoped, tag = 'input window, operand 0']
    #allocation4 [shape = 's32[2]{0}', space=sflag, size = 0x8, scoped, tag = 'scoped memory for tpu_custom_call.1']
    #allocation5 [shape = 's32[2]{0}', space=sflag, size = 0x8, scoped, tag = 'scoped memory for tpu_custom_call.1']
    #allocation6 [shape = 'u8[393216]{0}', space=vmem, size = 0x60000, scoped, tag = 'input window, operand 1, single buffered']
    #allocation7 [shape = 's32[1]{0}', space=sflag, size = 0x4, scoped, tag = 'scoped memory for tpu_custom_call.1']
    #allocation8 [shape = 'u8[65536]{0}', space=vmem, size = 0x10000, scoped, tag = 'input window, operand 3, single buffered']
    #allocation9 [shape = 'u8[1024]{0}', space=vmem, size = 0x400, scoped, tag = 'output window, operand 0']
    %14 = vsyncpa [#allocation4], 0
    %s15 = scalar_lea.sflag [#allocation4], 1
    %16 = vsyncpa %s15, 0
    %17 = vsyncpa [#allocation7], 0
    %18 = vsyncpa [#allocation5], 0
    %s19 = scalar_lea.sflag [#allocation5], 1
    %20 = vsyncpa %s19, 0
    loop: start=0, step=1, limit=4
    $region2: #{tpu_custom_call.1} parent=1 // loop_pre_header
      _
    $region3: #{tpu_custom_call.1} parent=1 // loop_header
      %s22 = sphi 0, %s26
      %p23 = scmp.ge.s32.totalorder %s22, 4
      %s32 = sphi 0, %s34
      %s35 = sphi 0, %s32
      %s36 = sphi 0, %s35
      %s52 = sphi 0, %s36
      %s56 = sphi 0, %s56
      %s58 = sphi 0, %s56
      %s59 = sphi 0, %s58
      %s73 = sphi 0, %s59
      %s77 = sphi 0, %s77
      %s79 = sphi 0, %s77
      %s80 = sphi 0, %s79
      %s94 = sphi 0, %s80
      %s98 = sphi 0, %s98
      %s100 = sphi 0, %s98
      %s101 = sphi 0, %s100
      %s115 = sphi 0, %s101
      %s119 = sphi 0, %s119
      %s121 = sphi 0, %s119
      %s122 = sphi 0, %s121
      %s136 = sphi 0, %s122
      %s140 = sphi 0, %s140
      %s142 = sphi 0, %s140
      %s143 = sphi 0, %s142
      %s157 = sphi 0, %s143
      %s161 = sphi 0, %s161
      %s163 = sphi 0, %s161
      %s164 = sphi 0, %s163
      %s178 = sphi 0, %s164
      %s184 = sphi 0, %s186
      %s187 = sphi 0, %s184
      %s188 = sphi 0, %s187
      %s204 = sphi 0, %s188
    $region4: #{tpu_custom_call.1} parent=1 // loop_header_branch
      %25 = sbr.rel (%p23) target = $region8
    $region5: #{tpu_custom_call.1} parent=1 // loop_body
      %s27 = ssub.s32 %s22, 1
      %s28 = ssub.s32 %s22, 2
      %s29 = sadd.s32 %s22, 1
      %s30 = ssub.s32 %s22, %s29
      %p31 = scmp.eq.s32.totalorder %s30, 0
      %s33 = sadd.s32 %s32, 1
      %s34 = scalar_select %p31, %s32, %s33
      %p37 = pneg %p31
      %p38 = scmp.eq.s32.totalorder %s22, 1
      %p39 = por %p37, %p38
      %p40 = scmp.ne.s32.totalorder %s32, %s35
      %p41 = scmp.eq.s32.totalorder %s22, 0
      %p42 = por %p40, %p41
      %p43 = scmp.ne.s32.totalorder %s32, %s35
      %p44 = scmp.eq.s32.totalorder %s27, 1
      %p45 = por %p43, %p44
      %p46 = scmp.ne.s32.totalorder %s35, %s36
      %p47 = scmp.eq.s32.totalorder %s27, 0
      %p48 = por %p46, %p47
      %p49 = scmp.ne.s32.totalorder %s35, %s36
      %p50 = scmp.eq.s32.totalorder %s28, 1
      %p51 = por %p49, %p50
      %p53 = scmp.ne.s32.totalorder %s36, %s52
      %p54 = scmp.eq.s32.totalorder %s28, 0
      %p55 = por %p53, %p54
      %s57 = sadd.s32 %s56, 1
      %p60 = scmp.eq.s32.totalorder %s22, 1
      %p61 = scmp.ne.s32.totalorder %s56, %s58
      %p62 = scmp.eq.s32.totalorder %s22, 0
      %p63 = por %p61, %p62
      %p64 = scmp.ne.s32.totalorder %s56, %s58
      %p65 = scmp.eq.s32.totalorder %s27, 1
      %p66 = por %p64, %p65
      %p67 = scmp.ne.s32.totalorder %s58, %s59
      %p68 = scmp.eq.s32.totalorder %s27, 0
      %p69 = por %p67, %p68
      %p70 = scmp.ne.s32.totalorder %s58, %s59
      %p71 = scmp.eq.s32.totalorder %s28, 1
      %p72 = por %p70, %p71
      %p74 = scmp.ne.s32.totalorder %s59, %s73
      %p75 = scmp.eq.s32.totalorder %s28, 0
      %p76 = por %p74, %p75
      %s78 = sadd.s32 %s77, 1
      %p81 = scmp.eq.s32.totalorder %s22, 1
      %p82 = scmp.ne.s32.totalorder %s77, %s79
      %p83 = scmp.eq.s32.totalorder %s22, 0
      %p84 = por %p82, %p83
      %p85 = scmp.ne.s32.totalorder %s77, %s79
      %p86 = scmp.eq.s32.totalorder %s27, 1
      %p87 = por %p85, %p86
      %p88 = scmp.ne.s32.totalorder %s79, %s80
      %p89 = scmp.eq.s32.totalorder %s27, 0
      %p90 = por %p88, %p89
      %p91 = scmp.ne.s32.totalorder %s79, %s80
      %p92 = scmp.eq.s32.totalorder %s28, 1
      %p93 = por %p91, %p92
      %p95 = scmp.ne.s32.totalorder %s80, %s94
      %p96 = scmp.eq.s32.totalorder %s28, 0
      %p97 = por %p95, %p96
      %s99 = sadd.s32 %s98, 1
      %p102 = scmp.eq.s32.totalorder %s22, 1
      %p103 = scmp.ne.s32.totalorder %s98, %s100
      %p104 = scmp.eq.s32.totalorder %s22, 0
      %p105 = por %p103, %p104
      %p106 = scmp.ne.s32.totalorder %s98, %s100
      %p107 = scmp.eq.s32.totalorder %s27, 1
      %p108 = por %p106, %p107
      %p109 = scmp.ne.s32.totalorder %s100, %s101
      %p110 = scmp.eq.s32.totalorder %s27, 0
      %p111 = por %p109, %p110
      %p112 = scmp.ne.s32.totalorder %s100, %s101
      %p113 = scmp.eq.s32.totalorder %s28, 1
      %p114 = por %p112, %p113
      %p116 = scmp.ne.s32.totalorder %s101, %s115
      %p117 = scmp.eq.s32.totalorder %s28, 0
      %p118 = por %p116, %p117
      %s120 = sadd.s32 %s119, 1
      %p123 = scmp.eq.s32.totalorder %s22, 1
      %p124 = scmp.ne.s32.totalorder %s119, %s121
      %p125 = scmp.eq.s32.totalorder %s22, 0
      %p126 = por %p124, %p125
      %p127 = scmp.ne.s32.totalorder %s119, %s121
      %p128 = scmp.eq.s32.totalorder %s27, 1
      %p129 = por %p127, %p128
      %p130 = scmp.ne.s32.totalorder %s121, %s122
      %p131 = scmp.eq.s32.totalorder %s27, 0
      %p132 = por %p130, %p131
      %p133 = scmp.ne.s32.totalorder %s121, %s122
      %p134 = scmp.eq.s32.totalorder %s28, 1
      %p135 = por %p133, %p134
      %p137 = scmp.ne.s32.totalorder %s122, %s136
      %p138 = scmp.eq.s32.totalorder %s28, 0
      %p139 = por %p137, %p138
      %s141 = sadd.s32 %s140, 1
      %p144 = scmp.eq.s32.totalorder %s22, 1
      %p145 = scmp.ne.s32.totalorder %s140, %s142
      %p146 = scmp.eq.s32.totalorder %s22, 0
      %p147 = por %p145, %p146
      %p148 = scmp.ne.s32.totalorder %s140, %s142
      %p149 = scmp.eq.s32.totalorder %s27, 1
      %p150 = por %p148, %p149
      %p151 = scmp.ne.s32.totalorder %s142, %s143
      %p152 = scmp.eq.s32.totalorder %s27, 0
      %p153 = por %p151, %p152
      %p154 = scmp.ne.s32.totalorder %s142, %s143
      %p155 = scmp.eq.s32.totalorder %s28, 1
      %p156 = por %p154, %p155
      %p158 = scmp.ne.s32.totalorder %s143, %s157
      %p159 = scmp.eq.s32.totalorder %s28, 0
      %p160 = por %p158, %p159
      %s162 = sadd.s32 %s161, 1
      %p165 = scmp.eq.s32.totalorder %s22, 1
      %p166 = scmp.ne.s32.totalorder %s161, %s163
      %p167 = scmp.eq.s32.totalorder %s22, 0
      %p168 = por %p166, %p167
      %p169 = scmp.ne.s32.totalorder %s161, %s163
      %p170 = scmp.eq.s32.totalorder %s27, 1
      %p171 = por %p169, %p170
      %p172 = scmp.ne.s32.totalorder %s163, %s164
      %p173 = scmp.eq.s32.totalorder %s27, 0
      %p174 = por %p172, %p173
      %p175 = scmp.ne.s32.totalorder %s163, %s164
      %p176 = scmp.eq.s32.totalorder %s28, 1
      %p177 = por %p175, %p176
      %p179 = scmp.ne.s32.totalorder %s164, %s178
      %p180 = scmp.eq.s32.totalorder %s28, 0
      %p181 = por %p179, %p180
      %s182 = ssub.s32 %s22, %s29
      %p183 = scmp.eq.s32.totalorder %s182, 0
      %s185 = sadd.s32 %s184, 1
      %s186 = scalar_select %p183, %s184, %s185
      %p189 = pneg %p183
      %p190 = scmp.eq.s32.totalorder %s22, 1
      %p191 = por %p189, %p190
      %p192 = scmp.ne.s32.totalorder %s184, %s187
      %p193 = scmp.eq.s32.totalorder %s22, 0
      %p194 = por %p192, %p193
      %p195 = scmp.ne.s32.totalorder %s184, %s187
      %p196 = scmp.eq.s32.totalorder %s27, 1
      %p197 = por %p195, %p196
      %p198 = scmp.ne.s32.totalorder %s187, %s188
      %p199 = scmp.eq.s32.totalorder %s27, 0
      %p200 = por %p198, %p199
      %p201 = scmp.ne.s32.totalorder %s187, %s188
      %p202 = scmp.eq.s32.totalorder %s28, 1
      %p203 = por %p201, %p202
      %p205 = scmp.ne.s32.totalorder %s188, %s204
      %p206 = scmp.eq.s32.totalorder %s28, 0
      %p207 = por %p205, %p206
      %p208 = scmp.le.s32.totalorder 1, %s22
      %p209 = scmp.lt.s32.totalorder %s22, 3
      %p210 = pnand %p208, %p209
      %p211 = pneg %p210
      // Predicated region
      $region9: #{tpu_custom_call.1} parent=5 // pred_check
        _
      $region10: #{tpu_custom_call.1} parent=5 // pred_check_branch
        %213 = sbr.rel (%p210) target = $region12
      $region11: #{tpu_custom_call.1} parent=5 // pred_region
        %s214 = ssub.s32 %s22, 1
        // Predicated region
        $region13: #{tpu_custom_call.1} parent=11 // pred_check
          %p215 = pneg %p69
        $region14: #{tpu_custom_call.1} parent=11 // pred_check_branch
          %217 = sbr.rel (%p215) target = $region16
        $region15: #{tpu_custom_call.1} parent=11 // pred_region
          %s219 = ssub.s32 12288, 12288
          %220 = vsyncadd [#allocation7], %s219
          %s221 = sshll.u32 [#allocation6], 4
          %s222 = int_to_ptr.vmem [resolvable:$true] %s221
          %227 = dma.hbm_to_vmem [thread:$0]  %s1, 12288, %s222, [#allocation7], 128, 128, 8
        $region16: #{tpu_custom_call.1} parent=11 // pred_fallthru
          _
        // Predicated region
        $region17: #{tpu_custom_call.1} parent=11 // pred_check
          %p228 = pneg %p90
        $region18: #{tpu_custom_call.1} parent=11 // pred_check_branch
          %230 = sbr.rel (%p228) target = $region20
        $region19: #{tpu_custom_call.1} parent=11 // pred_region
          _
        $region20: #{tpu_custom_call.1} parent=11 // pred_fallthru
          _
        // Predicated region
        $region21: #{tpu_custom_call.1} parent=11 // pred_check
          %p231 = pneg %p111
        $region22: #{tpu_custom_call.1} parent=11 // pred_check_branch
          %233 = sbr.rel (%p231) target = $region24
        $region23: #{tpu_custom_call.1} parent=11 // pred_region
          %s235 = ssub.s32 2048, 2048
          %236 = vsyncadd [#allocation7], %s235
          %s237 = sshll.u32 [#allocation8], 4
          %s238 = int_to_ptr.vmem [resolvable:$true] %s237
          %243 = dma.hbm_to_vmem [thread:$0]  %s3, 2048, %s238, [#allocation7], 64, 64, 4
        $region24: #{tpu_custom_call.1} parent=11 // pred_fallthru
          _
        // Predicated region
        $region25: #{tpu_custom_call.1} parent=11 // pred_check
          %p244 = pneg %p132
        $region26: #{tpu_custom_call.1} parent=11 // pred_check_branch
          %246 = sbr.rel (%p244) target = $region28
        $region27: #{tpu_custom_call.1} parent=11 // pred_region
          _
        $region28: #{tpu_custom_call.1} parent=11 // pred_fallthru
          _
        // Predicated region
        $region29: #{tpu_custom_call.1} parent=11 // pred_check
          %p247 = pneg %p153
        $region30: #{tpu_custom_call.1} parent=11 // pred_check_branch
          %249 = sbr.rel (%p247) target = $region32
        $region31: #{tpu_custom_call.1} parent=11 // pred_region
          _
        $region32: #{tpu_custom_call.1} parent=11 // pred_fallthru
          _
        // Predicated region
        $region33: #{tpu_custom_call.1} parent=11 // pred_check
          %p250 = pneg %p174
        $region34: #{tpu_custom_call.1} parent=11 // pred_check_branch
          %252 = sbr.rel (%p250) target = $region36
        $region35: #{tpu_custom_call.1} parent=11 // pred_region
          _
        $region36: #{tpu_custom_call.1} parent=11 // pred_fallthru
          _
      $region12: #{tpu_custom_call.1} parent=5 // pred_fallthru
        _
      %p253 = scmp.lt.s32.totalorder %s22, 2
      // Predicated region
      $region37: #{tpu_custom_call.1} parent=5 // pred_check
        %p254 = pneg %p253
      $region38: #{tpu_custom_call.1} parent=5 // pred_check_branch
        %256 = sbr.rel (%p254) target = $region40
      $region39: #{tpu_custom_call.1} parent=5 // pred_region
        // Predicated region
        $region41: #{tpu_custom_call.1} parent=39 // pred_check
          %p257 = pneg %p42
        $region42: #{tpu_custom_call.1} parent=39 // pred_check_branch
          %259 = sbr.rel (%p257) target = $region44
        $region43: #{tpu_custom_call.1} parent=39 // pred_region
          %s260 = sand.u32 %s32, 1
          %s261 = scalar_lea.sflag [#allocation4], %s260
          %s262 = sand.u32 %s32, 1
          %s263 = smul.addr %s262, 384
          %s264 = scalar_lea.vmem [#allocation3], %s263
          %s265 = smul.u32 16, %s22
          %s267 = ssub.s32 6144, 6144
          %268 = vsyncadd %s261, %s267
          %s269 = smul.addr %s265, 6
          %s270 = smul.addr %s269, 64
          %s271 = scalar_lea.hbm %s0, %s270
          %s272 = sshll.u32 %s264, 4
          %s273 = int_to_ptr.vmem [resolvable:$true] %s272
          %278 = dma.hbm_to_vmem [thread:$0]  %s271, 6144, %s273, %s261, 384, 384, 24
        $region44: #{tpu_custom_call.1} parent=39 // pred_fallthru
          _
      $region40: #{tpu_custom_call.1} parent=5 // pred_fallthru
        _
      %p279 = scmp.le.s32.totalorder 1, %s22
      %p280 = scmp.lt.s32.totalorder %s22, 3
      %p281 = pnand %p279, %p280
      %p282 = pneg %p281
      // Predicated region
      $region45: #{tpu_custom_call.1} parent=5 // pred_check
        _
      $region46: #{tpu_custom_call.1} parent=5 // pred_check_branch
        %284 = sbr.rel (%p281) target = $region48
      $region47: #{tpu_custom_call.1} parent=5 // pred_region
        %s285 = ssub.s32 %s22, 1
        %s286 = sand.u32 %s35, 1
        %s287 = scalar_lea.sflag [#allocation4], %s286
        %s288 = sand.u32 %s35, 1
        %s289 = smul.addr %s288, 384
        %s290 = scalar_lea.vmem [#allocation3], %s289
        // Predicated region
        $region49: #{tpu_custom_call.1} parent=47 // pred_check
          %p291 = pneg %p48
        $region50: #{tpu_custom_call.1} parent=47 // pred_check_branch
          %293 = sbr.rel (%p291) target = $region52
        $region51: #{tpu_custom_call.1} parent=47 // pred_region
          %294 = dma.done %s287, 6144
        $region52: #{tpu_custom_call.1} parent=47 // pred_fallthru
          _
        // Predicated region
        $region53: #{tpu_custom_call.1} parent=47 // pred_check
          %p295 = pneg %p69
        $region54: #{tpu_custom_call.1} parent=47 // pred_check_branch
          %297 = sbr.rel (%p295) target = $region56
        $region55: #{tpu_custom_call.1} parent=47 // pred_region
          %298 = dma.done [#allocation7], 12288
        $region56: #{tpu_custom_call.1} parent=47 // pred_fallthru
          _
        // Predicated region
        $region57: #{tpu_custom_call.1} parent=47 // pred_check
          %p299 = pneg %p111
        $region58: #{tpu_custom_call.1} parent=47 // pred_check_branch
          %301 = sbr.rel (%p299) target = $region60
        $region59: #{tpu_custom_call.1} parent=47 // pred_region
          %302 = dma.done [#allocation7], 2048
        $region60: #{tpu_custom_call.1} parent=47 // pred_fallthru
          _
        %s303 = sand.u32 %s35, 1
        %s304 = scalar_lea.sflag [#allocation4], %s303
        %s305 = sand.u32 %s35, 1
        %s306 = smul.addr %s305, 384
        %s307 = scalar_lea.vmem [#allocation3], %s306
        %p308 = pneg %p48
        %p309 = pneg %p45
        %p310 = pneg %p69
        %p311 = pneg %p66
        %p312 = pneg %p90
        %p313 = pneg %p87
        %p314 = pneg %p111
        %p315 = pneg %p108
        %p316 = pneg %p132
        %p317 = pneg %p129
        %p318 = pneg %p153
        %p319 = pneg %p150
        %p320 = pneg %p174
        %p321 = pneg %p171
        %p322 = pneg %p200
        %p323 = pneg %p197
        %s324 = sand.u32 %s187, 1
        %s325 = scalar_lea.sflag [#allocation5], %s324
        %s326 = sand.u32 %s187, 1
        %s327 = scalar_lea.vmem [#allocation9], %s326
        %s328 = smul.u32 16, %s27
        %v330 = vld [vmem:[%s290] sm:$0xff]
        %v331 = vld [vmem:[%s290 + $0x8] sm:$0xff]
        %v332 = vld [vmem:[%s290 + $0x10] sm:$0xff]
        %v333 = vld [vmem:[%s290 + $0x18] sm:$0xff]
        %v334 = vld [vmem:[%s290 + $0x20] sm:$0xff]
        %v335 = vld [vmem:[%s290 + $0x28] sm:$0xff]
        %v336 = vld [vmem:[%s290 + $0x30] sm:$0xff]
        %v337 = vld [vmem:[%s290 + $0x38] sm:$0xff]
        %v338 = vld [vmem:[%s290 + $0x40] sm:$0xff]
        %v339 = vld [vmem:[%s290 + $0x48] sm:$0xff]
        %v340 = vld [vmem:[%s290 + $0x50] sm:$0xff]
        %v341 = vld [vmem:[%s290 + $0x58] sm:$0xff]
        %v342 = vld [vmem:[%s290 + $0x60] sm:$0xff]
        %v343 = vld [vmem:[%s290 + $0x68] sm:$0xff]
        %v344 = vld [vmem:[%s290 + $0x70] sm:$0xff]
        %v345 = vld [vmem:[%s290 + $0x78] sm:$0xff]
        %v346 = vld [vmem:[%s290 + $0x80] sm:$0xff]
        %v347 = vld [vmem:[%s290 + $0x88] sm:$0xff]
        %v348 = vld [vmem:[%s290 + $0x90] sm:$0xff]
        %v349 = vld [vmem:[%s290 + $0x98] sm:$0xff]
        %v350 = vld [vmem:[%s290 + $0xa0] sm:$0xff]
        %v351 = vld [vmem:[%s290 + $0xa8] sm:$0xff]
        %v352 = vld [vmem:[%s290 + $0xb0] sm:$0xff]
        %v353 = vld [vmem:[%s290 + $0xb8] sm:$0xff]
        %v354 = vld [vmem:[%s290 + $0xc0] sm:$0xff]
        %v355 = vld [vmem:[%s290 + $0xc8] sm:$0xff]
        %v356 = vld [vmem:[%s290 + $0xd0] sm:$0xff]
        %v357 = vld [vmem:[%s290 + $0xd8] sm:$0xff]
        %v358 = vld [vmem:[%s290 + $0xe0] sm:$0xff]
        %v359 = vld [vmem:[%s290 + $0xe8] sm:$0xff]
        %v360 = vld [vmem:[%s290 + $0xf0] sm:$0xff]
        %v361 = vld [vmem:[%s290 + $0xf8] sm:$0xff]
        %v362 = vld [vmem:[%s290 + $0x100] sm:$0xff]
        %v363 = vld [vmem:[%s290 + $0x108] sm:$0xff]
        %v364 = vld [vmem:[%s290 + $0x110] sm:$0xff]
        %v365 = vld [vmem:[%s290 + $0x118] sm:$0xff]
        %v366 = vld [vmem:[%s290 + $0x120] sm:$0xff]
        %v367 = vld [vmem:[%s290 + $0x128] sm:$0xff]
        %v368 = vld [vmem:[%s290 + $0x130] sm:$0xff]
        %v369 = vld [vmem:[%s290 + $0x138] sm:$0xff]
        %v370 = vld [vmem:[%s290 + $0x140] sm:$0xff]
        %v371 = vld [vmem:[%s290 + $0x148] sm:$0xff]
        %v372 = vld [vmem:[%s290 + $0x150] sm:$0xff]
        %v373 = vld [vmem:[%s290 + $0x158] sm:$0xff]
        %v374 = vld [vmem:[%s290 + $0x160] sm:$0xff]
        %v375 = vld [vmem:[%s290 + $0x168] sm:$0xff]
        %v376 = vld [vmem:[%s290 + $0x170] sm:$0xff]
        %v377 = vld [vmem:[%s290 + $0x178] sm:$0xff]
        %v378 = vld [vmem:[#allocation6] sm:$0xff]
        %v379 = vld [vmem:[#allocation6 + $0x8] sm:$0xff]
        %v380 = vld [vmem:[#allocation6 + $0x10] sm:$0xff]
        %v381 = vld [vmem:[#allocation6 + $0x18] sm:$0xff]
        %v382 = vld [vmem:[#allocation6 + $0x20] sm:$0xff]
        %v383 = vld [vmem:[#allocation6 + $0x28] sm:$0xff]
        %v384 = vld [vmem:[#allocation6 + $0x30] sm:$0xff]
        %v385 = vld [vmem:[#allocation6 + $0x38] sm:$0xff]
        %v386 = vld [vmem:[#allocation6 + $0x40] sm:$0xff]
        %v387 = vld [vmem:[#allocation6 + $0x48] sm:$0xff]
        %v388 = vld [vmem:[#allocation6 + $0x50] sm:$0xff]
        %v389 = vld [vmem:[#allocation6 + $0x58] sm:$0xff]
        %v390 = vld [vmem:[#allocation6 + $0x60] sm:$0xff]
        %v391 = vld [vmem:[#allocation6 + $0x68] sm:$0xff]
        %v392 = vld [vmem:[#allocation6 + $0x70] sm:$0xff]
        %v393 = vld [vmem:[#allocation6 + $0x78] sm:$0xff]
        %v394 = vld [vmem:[#allocation6 + $0x80] sm:$0xff]
        %v395 = vld [vmem:[#allocation6 + $0x88] sm:$0xff]
        %v396 = vld [vmem:[#allocation6 + $0x90] sm:$0xff]
        %v397 = vld [vmem:[#allocation6 + $0x98] sm:$0xff]
        %v398 = vld [vmem:[#allocation6 + $0xa0] sm:$0xff]
        %v399 = vld [vmem:[#allocation6 + $0xa8] sm:$0xff]
        %v400 = vld [vmem:[#allocation6 + $0xb0] sm:$0xff]
        %v401 = vld [vmem:[#allocation6 + $0xb8] sm:$0xff]
        %v402 = vld [vmem:[#allocation6 + $0xc0] sm:$0xff]
        %v403 = vld [vmem:[#allocation6 + $0xc8] sm:$0xff]
        %v404 = vld [vmem:[#allocation6 + $0xd0] sm:$0xff]
        %v405 = vld [vmem:[#allocation6 + $0xd8] sm:$0xff]
        %v406 = vld [vmem:[#allocation6 + $0xe0] sm:$0xff]
        %v407 = vld [vmem:[#allocation6 + $0xe8] sm:$0xff]
        %v408 = vld [vmem:[#allocation6 + $0xf0] sm:$0xff]
        %v409 = vld [vmem:[#allocation6 + $0xf8] sm:$0xff]
        %v410 = vld [vmem:[#allocation6 + $0x100] sm:$0xff]
        %v411 = vld [vmem:[#allocation6 + $0x108] sm:$0xff]
        %v412 = vld [vmem:[#allocation6 + $0x110] sm:$0xff]
        %v413 = vld [vmem:[#allocation6 + $0x118] sm:$0xff]
        %v414 = vld [vmem:[#allocation6 + $0x120] sm:$0xff]
        %v415 = vld [vmem:[#allocation6 + $0x128] sm:$0xff]
        %v416 = vld [vmem:[#allocation6 + $0x130] sm:$0xff]
        %v417 = vld [vmem:[#allocation6 + $0x138] sm:$0xff]
        %v418 = vld [vmem:[#allocation6 + $0x140] sm:$0xff]
        %v419 = vld [vmem:[#allocation6 + $0x148] sm:$0xff]
        %v420 = vld [vmem:[#allocation6 + $0x150] sm:$0xff]
        %v421 = vld [vmem:[#allocation6 + $0x158] sm:$0xff]
        %v422 = vld [vmem:[#allocation6 + $0x160] sm:$0xff]
        %v423 = vld [vmem:[#allocation6 + $0x168] sm:$0xff]
        %v424 = vld [vmem:[#allocation6 + $0x170] sm:$0xff]
        %v425 = vld [vmem:[#allocation6 + $0x178] sm:$0xff]
        %v426 = vld [vmem:[#allocation6 + $0x180] sm:$0xff]
        %v427 = vld [vmem:[#allocation6 + $0x188] sm:$0xff]
        %v428 = vld [vmem:[#allocation6 + $0x190] sm:$0xff]
        %v429 = vld [vmem:[#allocation6 + $0x198] sm:$0xff]
        %v430 = vld [vmem:[#allocation6 + $0x1a0] sm:$0xff]
        %v431 = vld [vmem:[#allocation6 + $0x1a8] sm:$0xff]
        %v432 = vld [vmem:[#allocation6 + $0x1b0] sm:$0xff]
        %v433 = vld [vmem:[#allocation6 + $0x1b8] sm:$0xff]
        %v434 = vld [vmem:[#allocation6 + $0x1c0] sm:$0xff]
        %v435 = vld [vmem:[#allocation6 + $0x1c8] sm:$0xff]
        %v436 = vld [vmem:[#allocation6 + $0x1d0] sm:$0xff]
        %v437 = vld [vmem:[#allocation6 + $0x1d8] sm:$0xff]
        %v438 = vld [vmem:[#allocation6 + $0x1e0] sm:$0xff]
        %v439 = vld [vmem:[#allocation6 + $0x1e8] sm:$0xff]
        %v440 = vld [vmem:[#allocation6 + $0x1f0] sm:$0xff]
        %v441 = vld [vmem:[#allocation6 + $0x1f8] sm:$0xff]
        %v442 = vld [vmem:[#allocation6 + $0x200] sm:$0xff]
        %v443 = vld [vmem:[#allocation6 + $0x208] sm:$0xff]
        %v444 = vld [vmem:[#allocation6 + $0x210] sm:$0xff]
        %v445 = vld [vmem:[#allocation6 + $0x218] sm:$0xff]
        %v446 = vld [vmem:[#allocation6 + $0x220] sm:$0xff]
        %v447 = vld [vmem:[#allocation6 + $0x228] sm:$0xff]
        %v448 = vld [vmem:[#allocation6 + $0x230] sm:$0xff]
        %v449 = vld [vmem:[#allocation6 + $0x238] sm:$0xff]
        %v450 = vld [vmem:[#allocation6 + $0x240] sm:$0xff]
        %v451 = vld [vmem:[#allocation6 + $0x248] sm:$0xff]
        %v452 = vld [vmem:[#allocation6 + $0x250] sm:$0xff]
        %v453 = vld [vmem:[#allocation6 + $0x258] sm:$0xff]
        %v454 = vld [vmem:[#allocation6 + $0x260] sm:$0xff]
        %v455 = vld [vmem:[#allocation6 + $0x268] sm:$0xff]
        %v456 = vld [vmem:[#allocation6 + $0x270] sm:$0xff]
        %v457 = vld [vmem:[#allocation6 + $0x278] sm:$0xff]
        %v458 = vld [vmem:[#allocation6 + $0x280] sm:$0xff]
        %v459 = vld [vmem:[#allocation6 + $0x288] sm:$0xff]
        %v460 = vld [vmem:[#allocation6 + $0x290] sm:$0xff]
        %v461 = vld [vmem:[#allocation6 + $0x298] sm:$0xff]
        %v462 = vld [vmem:[#allocation6 + $0x2a0] sm:$0xff]
        %v463 = vld [vmem:[#allocation6 + $0x2a8] sm:$0xff]
        %v464 = vld [vmem:[#allocation6 + $0x2b0] sm:$0xff]
        %v465 = vld [vmem:[#allocation6 + $0x2b8] sm:$0xff]
        %v466 = vld [vmem:[#allocation6 + $0x2c0] sm:$0xff]
        %v467 = vld [vmem:[#allocation6 + $0x2c8] sm:$0xff]
        %v468 = vld [vmem:[#allocation6 + $0x2d0] sm:$0xff]
        %v469 = vld [vmem:[#allocation6 + $0x2d8] sm:$0xff]
        %v470 = vld [vmem:[#allocation6 + $0x2e0] sm:$0xff]
        %v471 = vld [vmem:[#allocation6 + $0x2e8] sm:$0xff]
        %v472 = vld [vmem:[#allocation6 + $0x2f0] sm:$0xff]
        %v473 = vld [vmem:[#allocation6 + $0x2f8] sm:$0xff]
        %v474 = vld [vmem:[%s2] sm:$0x3]
        %v476 = vlaneseq
        %v477 = vshrl.u32 %v476, 7
        %v478 = vsub.s32 0, %v477
        %v479 = vrot.slane %v474, %v478
        %v480 = vlaneseq
        %v481 = vshrl.u32 %v480, 7
        %v482 = vsub.s32 1, %v481
        %v483 = vrot.slane %v474, %v482
        %v534 = vunpack.c.l.b16 %v330
        %v535 = vunpack.c.h.b16 %v330
        %v536 = vunpack.c.l.b16 %v331
        %v537 = vunpack.c.h.b16 %v331
        %v538 = vunpack.c.l.b16 %v332
        %v539 = vunpack.c.h.b16 %v332
        %v540 = vunpack.c.l.b16 %v333
        %v541 = vunpack.c.h.b16 %v333
        %v542 = vunpack.c.l.b16 %v334
        %v543 = vunpack.c.h.b16 %v334
        %v544 = vunpack.c.l.b16 %v335
        %v545 = vunpack.c.h.b16 %v335
        %v546 = vunpack.c.l.b16 %v336
        %v547 = vunpack.c.h.b16 %v336
        %v548 = vunpack.c.l.b16 %v337
        %v549 = vunpack.c.h.b16 %v337
        %v550 = vunpack.c.l.b16 %v338
        %v551 = vunpack.c.h.b16 %v338
        %v552 = vunpack.c.l.b16 %v339
        %v553 = vunpack.c.h.b16 %v339
        %v554 = vunpack.c.l.b16 %v340
        %v555 = vunpack.c.h.b16 %v340
        %v556 = vunpack.c.l.b16 %v341
        %v557 = vunpack.c.h.b16 %v341
        %v558 = vunpack.c.l.b16 %v342
        %v559 = vunpack.c.h.b16 %v342
        %v560 = vunpack.c.l.b16 %v343
        %v561 = vunpack.c.h.b16 %v343
        %v562 = vunpack.c.l.b16 %v344
        %v563 = vunpack.c.h.b16 %v344
        %v564 = vunpack.c.l.b16 %v345
        %v565 = vunpack.c.h.b16 %v345
        %v566 = vunpack.c.l.b16 %v346
        %v567 = vunpack.c.h.b16 %v346
        %v568 = vunpack.c.l.b16 %v347
        %v569 = vunpack.c.h.b16 %v347
        %v570 = vunpack.c.l.b16 %v348
        %v571 = vunpack.c.h.b16 %v348
        %v572 = vunpack.c.l.b16 %v349
        %v573 = vunpack.c.h.b16 %v349
        %v574 = vunpack.c.l.b16 %v350
        %v575 = vunpack.c.h.b16 %v350
        %v576 = vunpack.c.l.b16 %v351
        %v577 = vunpack.c.h.b16 %v351
        %v578 = vunpack.c.l.b16 %v352
        %v579 = vunpack.c.h.b16 %v352
        %v580 = vunpack.c.l.b16 %v353
        %v581 = vunpack.c.h.b16 %v353
        %v582 = vunpack.c.l.b16 %v354
        %v583 = vunpack.c.h.b16 %v354
        %v584 = vunpack.c.l.b16 %v355
        %v585 = vunpack.c.h.b16 %v355
        %v586 = vunpack.c.l.b16 %v356
        %v587 = vunpack.c.h.b16 %v356
        %v588 = vunpack.c.l.b16 %v357
        %v589 = vunpack.c.h.b16 %v357
        %v590 = vunpack.c.l.b16 %v358
        %v591 = vunpack.c.h.b16 %v358
        %v592 = vunpack.c.l.b16 %v359
        %v593 = vunpack.c.h.b16 %v359
        %v594 = vunpack.c.l.b16 %v360
        %v595 = vunpack.c.h.b16 %v360
        %v596 = vunpack.c.l.b16 %v361
        %v597 = vunpack.c.h.b16 %v361
        %v598 = vunpack.c.l.b16 %v362
        %v599 = vunpack.c.h.b16 %v362
        %v600 = vunpack.c.l.b16 %v363
        %v601 = vunpack.c.h.b16 %v363
        %v602 = vunpack.c.l.b16 %v364
        %v603 = vunpack.c.h.b16 %v364
        %v604 = vunpack.c.l.b16 %v365
        %v605 = vunpack.c.h.b16 %v365
        %v606 = vunpack.c.l.b16 %v366
        %v607 = vunpack.c.h.b16 %v366
        %v608 = vunpack.c.l.b16 %v367
        %v609 = vunpack.c.h.b16 %v367
        %v610 = vunpack.c.l.b16 %v368
        %v611 = vunpack.c.h.b16 %v368
        %v612 = vunpack.c.l.b16 %v369
        %v613 = vunpack.c.h.b16 %v369
        %v614 = vunpack.c.l.b16 %v370
        %v615 = vunpack.c.h.b16 %v370
        %v616 = vunpack.c.l.b16 %v371
        %v617 = vunpack.c.h.b16 %v371
        %v618 = vunpack.c.l.b16 %v372
        %v619 = vunpack.c.h.b16 %v372
        %v620 = vunpack.c.l.b16 %v373
        %v621 = vunpack.c.h.b16 %v373
        %v622 = vunpack.c.l.b16 %v374
        %v623 = vunpack.c.h.b16 %v374
        %v624 = vunpack.c.l.b16 %v375
        %v625 = vunpack.c.h.b16 %v375
        %v626 = vunpack.c.l.b16 %v376
        %v627 = vunpack.c.h.b16 %v376
        %v628 = vunpack.c.l.b16 %v377
        %v629 = vunpack.c.h.b16 %v377
        %v630 = vpack.c.b16 %v540, %v534
        %v631 = vpack.c.b16 %v541, %v535
        %v632 = vpack.c.b16 %v542, %v536
        %v633 = vpack.c.b16 %v543, %v537
        %v634 = vpack.c.b16 %v544, %v538
        %v635 = vpack.c.b16 %v545, %v539
        %v636 = vpack.c.b16 %v552, %v546
        %v637 = vpack.c.b16 %v553, %v547
        %v638 = vpack.c.b16 %v554, %v548
        %v639 = vpack.c.b16 %v555, %v549
        %v640 = vpack.c.b16 %v556, %v550
        %v641 = vpack.c.b16 %v557, %v551
        %v642 = vpack.c.b16 %v564, %v558
        %v643 = vpack.c.b16 %v565, %v559
        %v644 = vpack.c.b16 %v566, %v560
        %v645 = vpack.c.b16 %v567, %v561
        %v646 = vpack.c.b16 %v568, %v562
        %v647 = vpack.c.b16 %v569, %v563
        %v648 = vpack.c.b16 %v576, %v570
        %v649 = vpack.c.b16 %v577, %v571
        %v650 = vpack.c.b16 %v578, %v572
        %v651 = vpack.c.b16 %v579, %v573
        %v652 = vpack.c.b16 %v580, %v574
        %v653 = vpack.c.b16 %v581, %v575
        %v654 = vpack.c.b16 %v588, %v582
        %v655 = vpack.c.b16 %v589, %v583
        %v656 = vpack.c.b16 %v590, %v584
        %v657 = vpack.c.b16 %v591, %v585
        %v658 = vpack.c.b16 %v592, %v586
        %v659 = vpack.c.b16 %v593, %v587
        %v660 = vpack.c.b16 %v600, %v594
        %v661 = vpack.c.b16 %v601, %v595
        %v662 = vpack.c.b16 %v602, %v596
        %v663 = vpack.c.b16 %v603, %v597
        %v664 = vpack.c.b16 %v604, %v598
        %v665 = vpack.c.b16 %v605, %v599
        %v666 = vpack.c.b16 %v612, %v606
        %v667 = vpack.c.b16 %v613, %v607
        %v668 = vpack.c.b16 %v614, %v608
        %v669 = vpack.c.b16 %v615, %v609
        %v670 = vpack.c.b16 %v616, %v610
        %v671 = vpack.c.b16 %v617, %v611
        %v672 = vpack.c.b16 %v624, %v618
        %v673 = vpack.c.b16 %v625, %v619
        %v674 = vpack.c.b16 %v626, %v620
        %v675 = vpack.c.b16 %v627, %v621
        %v676 = vpack.c.b16 %v628, %v622
        %v677 = vpack.c.b16 %v629, %v623
        %v822 = vunpack.c.l.b16 %v378
        %v823 = vunpack.c.h.b16 %v378
        %v824 = vunpack.c.l.b16 %v379
        %v825 = vunpack.c.h.b16 %v379
        %v826 = vunpack.c.l.b16 %v380
        %v827 = vunpack.c.h.b16 %v380
        %v828 = vunpack.c.l.b16 %v381
        %v829 = vunpack.c.h.b16 %v381
        %v830 = vunpack.c.l.b16 %v382
        %v831 = vunpack.c.h.b16 %v382
        %v832 = vunpack.c.l.b16 %v383
        %v833 = vunpack.c.h.b16 %v383
        %v834 = vunpack.c.l.b16 %v384
        %v835 = vunpack.c.h.b16 %v384
        %v836 = vunpack.c.l.b16 %v385
        %v837 = vunpack.c.h.b16 %v385
        %v838 = vunpack.c.l.b16 %v386
        %v839 = vunpack.c.h.b16 %v386
        %v840 = vunpack.c.l.b16 %v387
        %v841 = vunpack.c.h.b16 %v387
        %v842 = vunpack.c.l.b16 %v388
        %v843 = vunpack.c.h.b16 %v388
        %v844 = vunpack.c.l.b16 %v389
        %v845 = vunpack.c.h.b16 %v389
        %v846 = vunpack.c.l.b16 %v390
        %v847 = vunpack.c.h.b16 %v390
        %v848 = vunpack.c.l.b16 %v391
        %v849 = vunpack.c.h.b16 %v391
        %v850 = vunpack.c.l.b16 %v392
        %v851 = vunpack.c.h.b16 %v392
        %v852 = vunpack.c.l.b16 %v393
        %v853 = vunpack.c.h.b16 %v393
        %v854 = vunpack.c.l.b16 %v394
        %v855 = vunpack.c.h.b16 %v394
        %v856 = vunpack.c.l.b16 %v395
        %v857 = vunpack.c.h.b16 %v395
        %v858 = vunpack.c.l.b16 %v396
        %v859 = vunpack.c.h.b16 %v396
        %v860 = vunpack.c.l.b16 %v397
        %v861 = vunpack.c.h.b16 %v397
        %v862 = vunpack.c.l.b16 %v398
        %v863 = vunpack.c.h.b16 %v398
        %v864 = vunpack.c.l.b16 %v399
        %v865 = vunpack.c.h.b16 %v399
        %v866 = vunpack.c.l.b16 %v400
        %v867 = vunpack.c.h.b16 %v400
        %v868 = vunpack.c.l.b16 %v401
        %v869 = vunpack.c.h.b16 %v401
        %v870 = vunpack.c.l.b16 %v402
        %v871 = vunpack.c.h.b16 %v402
        %v872 = vunpack.c.l.b16 %v403
        %v873 = vunpack.c.h.b16 %v403
        %v874 = vunpack.c.l.b16 %v404
        %v875 = vunpack.c.h.b16 %v404
        %v876 = vunpack.c.l.b16 %v405
        %v877 = vunpack.c.h.b16 %v405
        %v878 = vunpack.c.l.b16 %v406
        %v879 = vunpack.c.h.b16 %v406
        %v880 = vunpack.c.l.b16 %v407
        %v881 = vunpack.c.h.b16 %v407
        %v882 = vunpack.c.l.b16 %v408
        %v883 = vunpack.c.h.b16 %v408
        %v884 = vunpack.c.l.b16 %v409
        %v885 = vunpack.c.h.b16 %v409
        %v886 = vunpack.c.l.b16 %v410
        %v887 = vunpack.c.h.b16 %v410
        %v888 = vunpack.c.l.b16 %v411
        %v889 = vunpack.c.h.b16 %v411
        %v890 = vunpack.c.l.b16 %v412
        %v891 = vunpack.c.h.b16 %v412
        %v892 = vunpack.c.l.b16 %v413
        %v893 = vunpack.c.h.b16 %v413
        %v894 = vunpack.c.l.b16 %v414
        %v895 = vunpack.c.h.b16 %v414
        %v896 = vunpack.c.l.b16 %v415
        %v897 = vunpack.c.h.b16 %v415
        %v898 = vunpack.c.l.b16 %v416
        %v899 = vunpack.c.h.b16 %v416
        %v900 = vunpack.c.l.b16 %v417
        %v901 = vunpack.c.h.b16 %v417
        %v902 = vunpack.c.l.b16 %v418
        %v903 = vunpack.c.h.b16 %v418
        %v904 = vunpack.c.l.b16 %v419
        %v905 = vunpack.c.h.b16 %v419
        %v906 = vunpack.c.l.b16 %v420
        %v907 = vunpack.c.h.b16 %v420
        %v908 = vunpack.c.l.b16 %v421
        %v909 = vunpack.c.h.b16 %v421
        %v910 = vunpack.c.l.b16 %v422
        %v911 = vunpack.c.h.b16 %v422
        %v912 = vunpack.c.l.b16 %v423
        %v913 = vunpack.c.h.b16 %v423
        %v914 = vunpack.c.l.b16 %v424
        %v915 = vunpack.c.h.b16 %v424
        %v916 = vunpack.c.l.b16 %v425
        %v917 = vunpack.c.h.b16 %v425
        %v918 = vunpack.c.l.b16 %v426
        %v919 = vunpack.c.h.b16 %v426
        %v920 = vunpack.c.l.b16 %v427
        %v921 = vunpack.c.h.b16 %v427
        %v922 = vunpack.c.l.b16 %v428
        %v923 = vunpack.c.h.b16 %v428
        %v924 = vunpack.c.l.b16 %v429
        %v925 = vunpack.c.h.b16 %v429
        %v926 = vunpack.c.l.b16 %v430
        %v927 = vunpack.c.h.b16 %v430
        %v928 = vunpack.c.l.b16 %v431
        %v929 = vunpack.c.h.b16 %v431
        %v930 = vunpack.c.l.b16 %v432
        %v931 = vunpack.c.h.b16 %v432
        %v932 = vunpack.c.l.b16 %v433
        %v933 = vunpack.c.h.b16 %v433
        %v934 = vunpack.c.l.b16 %v434
        %v935 = vunpack.c.h.b16 %v434
        %v936 = vunpack.c.l.b16 %v435
        %v937 = vunpack.c.h.b16 %v435
        %v938 = vunpack.c.l.b16 %v436
        %v939 = vunpack.c.h.b16 %v436
        %v940 = vunpack.c.l.b16 %v437
        %v941 = vunpack.c.h.b16 %v437
        %v942 = vunpack.c.l.b16 %v438
        %v943 = vunpack.c.h.b16 %v438
        %v944 = vunpack.c.l.b16 %v439
        %v945 = vunpack.c.h.b16 %v439
        %v946 = vunpack.c.l.b16 %v440
        %v947 = vunpack.c.h.b16 %v440
        %v948 = vunpack.c.l.b16 %v441
        %v949 = vunpack.c.h.b16 %v441
        %v950 = vunpack.c.l.b16 %v442
        %v951 = vunpack.c.h.b16 %v442
        %v952 = vunpack.c.l.b16 %v443
        %v953 = vunpack.c.h.b16 %v443
        %v954 = vunpack.c.l.b16 %v444
        %v955 = vunpack.c.h.b16 %v444
        %v956 = vunpack.c.l.b16 %v445
        %v957 = vunpack.c.h.b16 %v445
        %v958 = vunpack.c.l.b16 %v446
        %v959 = vunpack.c.h.b16 %v446
        %v960 = vunpack.c.l.b16 %v447
        %v961 = vunpack.c.h.b16 %v447
        %v962 = vunpack.c.l.b16 %v448
        %v963 = vunpack.c.h.b16 %v448
        %v964 = vunpack.c.l.b16 %v449
        %v965 = vunpack.c.h.b16 %v449
        %v966 = vunpack.c.l.b16 %v450
        %v967 = vunpack.c.h.b16 %v450
        %v968 = vunpack.c.l.b16 %v451
        %v969 = vunpack.c.h.b16 %v451
        %v970 = vunpack.c.l.b16 %v452
        %v971 = vunpack.c.h.b16 %v452
        %v972 = vunpack.c.l.b16 %v453
        %v973 = vunpack.c.h.b16 %v453
        %v974 = vunpack.c.l.b16 %v454
        %v975 = vunpack.c.h.b16 %v454
        %v976 = vunpack.c.l.b16 %v455
        %v977 = vunpack.c.h.b16 %v455
        %v978 = vunpack.c.l.b16 %v456
        %v979 = vunpack.c.h.b16 %v456
        %v980 = vunpack.c.l.b16 %v457
        %v981 = vunpack.c.h.b16 %v457
        %v982 = vunpack.c.l.b16 %v458
        %v983 = vunpack.c.h.b16 %v458
        %v984 = vunpack.c.l.b16 %v459
        %v985 = vunpack.c.h.b16 %v459
        %v986 = vunpack.c.l.b16 %v460
        %v987 = vunpack.c.h.b16 %v460
        %v988 = vunpack.c.l.b16 %v461
        %v989 = vunpack.c.h.b16 %v461
        %v990 = vunpack.c.l.b16 %v462
        %v991 = vunpack.c.h.b16 %v462
        %v992 = vunpack.c.l.b16 %v463
        %v993 = vunpack.c.h.b16 %v463
        %v994 = vunpack.c.l.b16 %v464
        %v995 = vunpack.c.h.b16 %v464
        %v996 = vunpack.c.l.b16 %v465
        %v997 = vunpack.c.h.b16 %v465
        %v998 = vunpack.c.l.b16 %v466
        %v999 = vunpack.c.h.b16 %v466
        %v1000 = vunpack.c.l.b16 %v467
        %v1001 = vunpack.c.h.b16 %v467
        %v1002 = vunpack.c.l.b16 %v468
        %v1003 = vunpack.c.h.b16 %v468
        %v1004 = vunpack.c.l.b16 %v469
        %v1005 = vunpack.c.h.b16 %v469
        %v1006 = vunpack.c.l.b16 %v470
        %v1007 = vunpack.c.h.b16 %v470
        %v1008 = vunpack.c.l.b16 %v471
        %v1009 = vunpack.c.h.b16 %v471
        %v1010 = vunpack.c.l.b16 %v472
        %v1011 = vunpack.c.h.b16 %v472
        %v1012 = vunpack.c.l.b16 %v473
        %v1013 = vunpack.c.h.b16 %v473
        %v1014 = vpack.c.b16 %v824, %v822
        %v1015 = vpack.c.b16 %v825, %v823
        %v1016 = vpack.c.b16 %v828, %v826
        %v1017 = vpack.c.b16 %v829, %v827
        %v1018 = vpack.c.b16 %v832, %v830
        %v1019 = vpack.c.b16 %v833, %v831
        %v1020 = vpack.c.b16 %v836, %v834
        %v1021 = vpack.c.b16 %v837, %v835
        %v1022 = vpack.c.b16 %v840, %v838
        %v1023 = vpack.c.b16 %v841, %v839
        %v1024 = vpack.c.b16 %v844, %v842
        %v1025 = vpack.c.b16 %v845, %v843
        %v1026 = vpack.c.b16 %v848, %v846
        %v1027 = vpack.c.b16 %v849, %v847
        %v1028 = vpack.c.b16 %v852, %v850
        %v1029 = vpack.c.b16 %v853, %v851
        %v1030 = vpack.c.b16 %v856, %v854
        %v1031 = vpack.c.b16 %v857, %v855
        %v1032 = vpack.c.b16 %v860, %v858
        %v1033 = vpack.c.b16 %v861, %v859
        %v1034 = vpack.c.b16 %v864, %v862
        %v1035 = vpack.c.b16 %v865, %v863
        %v1036 = vpack.c.b16 %v868, %v866
        %v1037 = vpack.c.b16 %v869, %v867
        %v1038 = vpack.c.b16 %v872, %v870
        %v1039 = vpack.c.b16 %v873, %v871
        %v1040 = vpack.c.b16 %v876, %v874
        %v1041 = vpack.c.b16 %v877, %v875
        %v1042 = vpack.c.b16 %v880, %v878
        %v1043 = vpack.c.b16 %v881, %v879
        %v1044 = vpack.c.b16 %v884, %v882
        %v1045 = vpack.c.b16 %v885, %v883
        %v1046 = vpack.c.b16 %v888, %v886
        %v1047 = vpack.c.b16 %v889, %v887
        %v1048 = vpack.c.b16 %v892, %v890
        %v1049 = vpack.c.b16 %v893, %v891
        %v1050 = vpack.c.b16 %v896, %v894
        %v1051 = vpack.c.b16 %v897, %v895
        %v1052 = vpack.c.b16 %v900, %v898
        %v1053 = vpack.c.b16 %v901, %v899
        %v1054 = vpack.c.b16 %v904, %v902
        %v1055 = vpack.c.b16 %v905, %v903
        %v1056 = vpack.c.b16 %v908, %v906
        %v1057 = vpack.c.b16 %v909, %v907
        %v1058 = vpack.c.b16 %v912, %v910
        %v1059 = vpack.c.b16 %v913, %v911
        %v1060 = vpack.c.b16 %v916, %v914
        %v1061 = vpack.c.b16 %v917, %v915
        %v1062 = vpack.c.b16 %v920, %v918
        %v1063 = vpack.c.b16 %v921, %v919
        %v1064 = vpack.c.b16 %v924, %v922
        %v1065 = vpack.c.b16 %v925, %v923
        %v1066 = vpack.c.b16 %v928, %v926
        %v1067 = vpack.c.b16 %v929, %v927
        %v1068 = vpack.c.b16 %v932, %v930
        %v1069 = vpack.c.b16 %v933, %v931
        %v1070 = vpack.c.b16 %v936, %v934
        %v1071 = vpack.c.b16 %v937, %v935
        %v1072 = vpack.c.b16 %v940, %v938
        %v1073 = vpack.c.b16 %v941, %v939
        %v1074 = vpack.c.b16 %v944, %v942
        %v1075 = vpack.c.b16 %v945, %v943
        %v1076 = vpack.c.b16 %v948, %v946
        %v1077 = vpack.c.b16 %v949, %v947
        %v1078 = vpack.c.b16 %v952, %v950
        %v1079 = vpack.c.b16 %v953, %v951
        %v1080 = vpack.c.b16 %v956, %v954
        %v1081 = vpack.c.b16 %v957, %v955
        %v1082 = vpack.c.b16 %v960, %v958
        %v1083 = vpack.c.b16 %v961, %v959
        %v1084 = vpack.c.b16 %v964, %v962
        %v1085 = vpack.c.b16 %v965, %v963
        %v1086 = vpack.c.b16 %v968, %v966
        %v1087 = vpack.c.b16 %v969, %v967
        %v1088 = vpack.c.b16 %v972, %v970
        %v1089 = vpack.c.b16 %v973, %v971
        %v1090 = vpack.c.b16 %v976, %v974
        %v1091 = vpack.c.b16 %v977, %v975
        %v1092 = vpack.c.b16 %v980, %v978
        %v1093 = vpack.c.b16 %v981, %v979
        %v1094 = vpack.c.b16 %v984, %v982
        %v1095 = vpack.c.b16 %v985, %v983
        %v1096 = vpack.c.b16 %v988, %v986
        %v1097 = vpack.c.b16 %v989, %v987
        %v1098 = vpack.c.b16 %v992, %v990
        %v1099 = vpack.c.b16 %v993, %v991
        %v1100 = vpack.c.b16 %v996, %v994
        %v1101 = vpack.c.b16 %v997, %v995
        %v1102 = vpack.c.b16 %v1000, %v998
        %v1103 = vpack.c.b16 %v1001, %v999
        %v1104 = vpack.c.b16 %v1004, %v1002
        %v1105 = vpack.c.b16 %v1005, %v1003
        %v1106 = vpack.c.b16 %v1008, %v1006
        %v1107 = vpack.c.b16 %v1009, %v1007
        %v1108 = vpack.c.b16 %v1012, %v1010
        %v1109 = vpack.c.b16 %v1013, %v1011
        %1206 = vmatprep.subr.bf16.mxu0 %v1029
        %1207 = vmatpush1.bf16.msra.mxu0 %v1028
        %1208 = vmatprep.subr.bf16.mxu0 %v1027
        %1209 = vmatpush1.bf16.msra.mxu0 %v1026
        %1210 = vmatprep.subr.bf16.mxu0 %v1025
        %1211 = vmatpush1.bf16.msra.mxu0 %v1024
        %1212 = vmatprep.subr.bf16.mxu0 %v1023
        %1213 = vmatpush1.bf16.msra.mxu0 %v1022
        %1214 = vmatprep.subr.bf16.mxu0 %v1021
        %1215 = vmatpush1.bf16.msra.mxu0 %v1020
        %1216 = vmatprep.subr.bf16.mxu0 %v1019
        %1217 = vmatpush1.bf16.msra.mxu0 %v1018
        %1218 = vmatprep.subr.bf16.mxu0 %v1017
        %1219 = vmatpush1.bf16.msra.mxu0 %v1016
        %1220 = vmatprep.subr.bf16.mxu0 %v1015
        %1221 = vmatpush1.bf16.msra.mxu0 %v1014
        %1222 = vmatprep.subr.bf16.mxu0 %v1045
        %1223 = vmatpush2.bf16.msra.mxu0 %v1044
        %1224 = vmatprep.subr.bf16.mxu0 %v1043
        %1225 = vmatpush2.bf16.msra.mxu0 %v1042
        %1226 = vmatprep.subr.bf16.mxu0 %v1041
        %1227 = vmatpush2.bf16.msra.mxu0 %v1040
        %1228 = vmatprep.subr.bf16.mxu0 %v1039
        %1229 = vmatpush2.bf16.msra.mxu0 %v1038
        %1230 = vmatprep.subr.bf16.mxu0 %v1037
        %1231 = vmatpush2.bf16.msra.mxu0 %v1036
        %1232 = vmatprep.subr.bf16.mxu0 %v1035
        %1233 = vmatpush2.bf16.msra.mxu0 %v1034
        %1234 = vmatprep.subr.bf16.mxu0 %v1033
        %1235 = vmatpush2.bf16.msra.mxu0 %v1032
        %1236 = vmatprep.subr.bf16.mxu0 %v1031
        %1237 = vmatpush2.bf16.msra.mxu0 %v1030
        %1238 = vmatprep.mubr.bf16.mxu0 %v631
        %1239 = vmatmul.mubr.bf16.gmra.mxu0 %v630
        %v1240 = vpop.f32.mrf.mxu0
        %v1241 = vadd.f32 %v479, %v1240
        %v1242 = vpop.f32.mrf.mxu0
        %v1243 = vadd.f32 %v483, %v1242
        %v1244 = vpop.f32.mrf.mxu0
        %v1245 = vadd.f32 %v479, %v1244
        %v1246 = vpop.f32.mrf.mxu0
        %v1247 = vadd.f32 %v483, %v1246
        %1248 = vmatprep.mubr.bf16.mxu0 %v637
        %1249 = vmatmul.mubr.bf16.gmra.mxu0 %v636
        %v1250 = vpop.f32.mrf.mxu0
        %v1251 = vadd.f32 %v479, %v1250
        %v1252 = vpop.f32.mrf.mxu0
        %v1253 = vadd.f32 %v483, %v1252
        %v1254 = vpop.f32.mrf.mxu0
        %v1255 = vadd.f32 %v479, %v1254
        %v1256 = vpop.f32.mrf.mxu0
        %v1257 = vadd.f32 %v483, %v1256
        %1258 = vmatprep.mubr.bf16.mxu0 %v643
        %1259 = vmatmul.mubr.bf16.gmra.mxu0 %v642
        %v1260 = vpop.f32.mrf.mxu0
        %v1261 = vadd.f32 %v479, %v1260
        %v1262 = vpop.f32.mrf.mxu0
        %v1263 = vadd.f32 %v483, %v1262
        %v1264 = vpop.f32.mrf.mxu0
        %v1265 = vadd.f32 %v479, %v1264
        %v1266 = vpop.f32.mrf.mxu0
        %v1267 = vadd.f32 %v483, %v1266
        %1268 = vmatprep.mubr.bf16.mxu0 %v649
        %1269 = vmatmul.mubr.bf16.gmra.mxu0 %v648
        %v1270 = vpop.f32.mrf.mxu0
        %v1271 = vadd.f32 %v479, %v1270
        %v1272 = vpop.f32.mrf.mxu0
        %v1273 = vadd.f32 %v483, %v1272
        %v1274 = vpop.f32.mrf.mxu0
        %v1275 = vadd.f32 %v479, %v1274
        %v1276 = vpop.f32.mrf.mxu0
        %v1277 = vadd.f32 %v483, %v1276
        %1278 = vmatprep.mubr.bf16.mxu0 %v655
        %1279 = vmatmul.mubr.bf16.gmra.mxu0 %v654
        %v1280 = vpop.f32.mrf.mxu0
        %v1281 = vadd.f32 %v479, %v1280
        %v1282 = vpop.f32.mrf.mxu0
        %v1283 = vadd.f32 %v483, %v1282
        %v1284 = vpop.f32.mrf.mxu0
        %v1285 = vadd.f32 %v479, %v1284
        %v1286 = vpop.f32.mrf.mxu0
        %v1287 = vadd.f32 %v483, %v1286
        %1288 = vmatprep.mubr.bf16.mxu0 %v661
        %1289 = vmatmul.mubr.bf16.gmra.mxu0 %v660
        %v1290 = vpop.f32.mrf.mxu0
        %v1291 = vadd.f32 %v479, %v1290
        %v1292 = vpop.f32.mrf.mxu0
        %v1293 = vadd.f32 %v483, %v1292
        %v1294 = vpop.f32.mrf.mxu0
        %v1295 = vadd.f32 %v479, %v1294
        %v1296 = vpop.f32.mrf.mxu0
        %v1297 = vadd.f32 %v483, %v1296
        %1298 = vmatprep.mubr.bf16.mxu0 %v667
        %1299 = vmatmul.mubr.bf16.gmra.mxu0 %v666
        %v1300 = vpop.f32.mrf.mxu0
        %v1301 = vadd.f32 %v479, %v1300
        %v1302 = vpop.f32.mrf.mxu0
        %v1303 = vadd.f32 %v483, %v1302
        %v1304 = vpop.f32.mrf.mxu0
        %v1305 = vadd.f32 %v479, %v1304
        %v1306 = vpop.f32.mrf.mxu0
        %v1307 = vadd.f32 %v483, %v1306
        %1308 = vmatprep.mubr.bf16.mxu0 %v673
        %1309 = vmatmul.mubr.bf16.gmra.mxu0 %v672
        %v1310 = vpop.f32.mrf.mxu0
        %v1311 = vadd.f32 %v479, %v1310
        %v1312 = vpop.f32.mrf.mxu0
        %v1313 = vadd.f32 %v483, %v1312
        %v1314 = vpop.f32.mrf.mxu0
        %v1315 = vadd.f32 %v479, %v1314
        %v1316 = vpop.f32.mrf.mxu0
        %v1317 = vadd.f32 %v483, %v1316
        %1318 = vdwg.mxu0
        %1319 = vmatprep.subr.bf16.mxu0 %v1061
        %1320 = vmatpush1.bf16.msra.mxu0 %v1060
        %1321 = vmatprep.subr.bf16.mxu0 %v1059
        %1322 = vmatpush1.bf16.msra.mxu0 %v1058
        %1323 = vmatprep.subr.bf16.mxu0 %v1057
        %1324 = vmatpush1.bf16.msra.mxu0 %v1056
        %1325 = vmatprep.subr.bf16.mxu0 %v1055
        %1326 = vmatpush1.bf16.msra.mxu0 %v1054
        %1327 = vmatprep.subr.bf16.mxu0 %v1053
        %1328 = vmatpush1.bf16.msra.mxu0 %v1052
        %1329 = vmatprep.subr.bf16.mxu0 %v1051
        %1330 = vmatpush1.bf16.msra.mxu0 %v1050
        %1331 = vmatprep.subr.bf16.mxu0 %v1049
        %1332 = vmatpush1.bf16.msra.mxu0 %v1048
        %1333 = vmatprep.subr.bf16.mxu0 %v1047
        %1334 = vmatpush1.bf16.msra.mxu0 %v1046
        %1335 = vmatprep.subr.bf16.mxu0 %v1077
        %1336 = vmatpush2.bf16.msra.mxu0 %v1076
        %1337 = vmatprep.subr.bf16.mxu0 %v1075
        %1338 = vmatpush2.bf16.msra.mxu0 %v1074
        %1339 = vmatprep.subr.bf16.mxu0 %v1073
        %1340 = vmatpush2.bf16.msra.mxu0 %v1072
        %1341 = vmatprep.subr.bf16.mxu0 %v1071
        %1342 = vmatpush2.bf16.msra.mxu0 %v1070
        %1343 = vmatprep.subr.bf16.mxu0 %v1069
        %1344 = vmatpush2.bf16.msra.mxu0 %v1068
        %1345 = vmatprep.subr.bf16.mxu0 %v1067
        %1346 = vmatpush2.bf16.msra.mxu0 %v1066
        %1347 = vmatprep.subr.bf16.mxu0 %v1065
        %1348 = vmatpush2.bf16.msra.mxu0 %v1064
        %1349 = vmatprep.subr.bf16.mxu0 %v1063
        %1350 = vmatpush2.bf16.msra.mxu0 %v1062
        %1351 = vmatprep.mubr.bf16.mxu0 %v633
        %1352 = vmatmul.mubr.bf16.gmra.mxu0 %v632
        %v1353 = vpop.f32.mrf.mxu0
        %v1354 = vadd.f32 %v1241, %v1353
        %v1355 = vpop.f32.mrf.mxu0
        %v1356 = vadd.f32 %v1243, %v1355
        %v1357 = vpop.f32.mrf.mxu0
        %v1358 = vadd.f32 %v1245, %v1357
        %v1359 = vpop.f32.mrf.mxu0
        %v1360 = vadd.f32 %v1247, %v1359
        %1361 = vmatprep.mubr.bf16.mxu0 %v639
        %1362 = vmatmul.mubr.bf16.gmra.mxu0 %v638
        %v1363 = vpop.f32.mrf.mxu0
        %v1364 = vadd.f32 %v1251, %v1363
        %v1365 = vpop.f32.mrf.mxu0
        %v1366 = vadd.f32 %v1253, %v1365
        %v1367 = vpop.f32.mrf.mxu0
        %v1368 = vadd.f32 %v1255, %v1367
        %v1369 = vpop.f32.mrf.mxu0
        %v1370 = vadd.f32 %v1257, %v1369
        %1371 = vmatprep.mubr.bf16.mxu0 %v645
        %1372 = vmatmul.mubr.bf16.gmra.mxu0 %v644
        %v1373 = vpop.f32.mrf.mxu0
        %v1374 = vadd.f32 %v1261, %v1373
        %v1375 = vpop.f32.mrf.mxu0
        %v1376 = vadd.f32 %v1263, %v1375
        %v1377 = vpop.f32.mrf.mxu0
        %v1378 = vadd.f32 %v1265, %v1377
        %v1379 = vpop.f32.mrf.mxu0
        %v1380 = vadd.f32 %v1267, %v1379
        %1381 = vmatprep.mubr.bf16.mxu0 %v651
        %1382 = vmatmul.mubr.bf16.gmra.mxu0 %v650
        %v1383 = vpop.f32.mrf.mxu0
        %v1384 = vadd.f32 %v1271, %v1383
        %v1385 = vpop.f32.mrf.mxu0
        %v1386 = vadd.f32 %v1273, %v1385
        %v1387 = vpop.f32.mrf.mxu0
        %v1388 = vadd.f32 %v1275, %v1387
        %v1389 = vpop.f32.mrf.mxu0
        %v1390 = vadd.f32 %v1277, %v1389
        %1391 = vmatprep.mubr.bf16.mxu0 %v657
        %1392 = vmatmul.mubr.bf16.gmra.mxu0 %v656
        %v1393 = vpop.f32.mrf.mxu0
        %v1394 = vadd.f32 %v1281, %v1393
        %v1395 = vpop.f32.mrf.mxu0
        %v1396 = vadd.f32 %v1283, %v1395
        %v1397 = vpop.f32.mrf.mxu0
        %v1398 = vadd.f32 %v1285, %v1397
        %v1399 = vpop.f32.mrf.mxu0
        %v1400 = vadd.f32 %v1287, %v1399
        %1401 = vmatprep.mubr.bf16.mxu0 %v663
        %1402 = vmatmul.mubr.bf16.gmra.mxu0 %v662
        %v1403 = vpop.f32.mrf.mxu0
        %v1404 = vadd.f32 %v1291, %v1403
        %v1405 = vpop.f32.mrf.mxu0
        %v1406 = vadd.f32 %v1293, %v1405
        %v1407 = vpop.f32.mrf.mxu0
        %v1408 = vadd.f32 %v1295, %v1407
        %v1409 = vpop.f32.mrf.mxu0
        %v1410 = vadd.f32 %v1297, %v1409
        %1411 = vmatprep.mubr.bf16.mxu0 %v669
        %1412 = vmatmul.mubr.bf16.gmra.mxu0 %v668
        %v1413 = vpop.f32.mrf.mxu0
        %v1414 = vadd.f32 %v1301, %v1413
        %v1415 = vpop.f32.mrf.mxu0
        %v1416 = vadd.f32 %v1303, %v1415
        %v1417 = vpop.f32.mrf.mxu0
        %v1418 = vadd.f32 %v1305, %v1417
        %v1419 = vpop.f32.mrf.mxu0
        %v1420 = vadd.f32 %v1307, %v1419
        %1421 = vmatprep.mubr.bf16.mxu0 %v675
        %1422 = vmatmul.mubr.bf16.gmra.mxu0 %v674
        %v1423 = vpop.f32.mrf.mxu0
        %v1424 = vadd.f32 %v1311, %v1423
        %v1425 = vpop.f32.mrf.mxu0
        %v1426 = vadd.f32 %v1313, %v1425
        %v1427 = vpop.f32.mrf.mxu0
        %v1428 = vadd.f32 %v1315, %v1427
        %v1429 = vpop.f32.mrf.mxu0
        %v1430 = vadd.f32 %v1317, %v1429
        %1431 = vdwg.mxu0
        %1432 = vmatprep.subr.bf16.mxu0 %v1093
        %1433 = vmatpush1.bf16.msra.mxu0 %v1092
        %1434 = vmatprep.subr.bf16.mxu0 %v1091
        %1435 = vmatpush1.bf16.msra.mxu0 %v1090
        %1436 = vmatprep.subr.bf16.mxu0 %v1089
        %1437 = vmatpush1.bf16.msra.mxu0 %v1088
        %1438 = vmatprep.subr.bf16.mxu0 %v1087
        %1439 = vmatpush1.bf16.msra.mxu0 %v1086
        %1440 = vmatprep.subr.bf16.mxu0 %v1085
        %1441 = vmatpush1.bf16.msra.mxu0 %v1084
        %1442 = vmatprep.subr.bf16.mxu0 %v1083
        %1443 = vmatpush1.bf16.msra.mxu0 %v1082
        %1444 = vmatprep.subr.bf16.mxu0 %v1081
        %1445 = vmatpush1.bf16.msra.mxu0 %v1080
        %1446 = vmatprep.subr.bf16.mxu0 %v1079
        %1447 = vmatpush1.bf16.msra.mxu0 %v1078
        %1448 = vmatprep.subr.bf16.mxu0 %v1109
        %1449 = vmatpush2.bf16.msra.mxu0 %v1108
        %1450 = vmatprep.subr.bf16.mxu0 %v1107
        %1451 = vmatpush2.bf16.msra.mxu0 %v1106
        %1452 = vmatprep.subr.bf16.mxu0 %v1105
        %1453 = vmatpush2.bf16.msra.mxu0 %v1104
        %1454 = vmatprep.subr.bf16.mxu0 %v1103
        %1455 = vmatpush2.bf16.msra.mxu0 %v1102
        %1456 = vmatprep.subr.bf16.mxu0 %v1101
        %1457 = vmatpush2.bf16.msra.mxu0 %v1100
        %1458 = vmatprep.subr.bf16.mxu0 %v1099
        %1459 = vmatpush2.bf16.msra.mxu0 %v1098
        %1460 = vmatprep.subr.bf16.mxu0 %v1097
        %1461 = vmatpush2.bf16.msra.mxu0 %v1096
        %1462 = vmatprep.subr.bf16.mxu0 %v1095
        %1463 = vmatpush2.bf16.msra.mxu0 %v1094
        %1464 = vmatprep.mubr.bf16.mxu0 %v635
        %1465 = vmatmul.mubr.bf16.gmra.mxu0 %v634
        %v1466 = vpop.f32.mrf.mxu0
        %v1467 = vadd.f32 %v1354, %v1466
        %v1468 = vpop.f32.mrf.mxu0
        %v1469 = vadd.f32 %v1356, %v1468
        %v1470 = vpop.f32.mrf.mxu0
        %v1471 = vadd.f32 %v1358, %v1470
        %v1472 = vpop.f32.mrf.mxu0
        %v1473 = vadd.f32 %v1360, %v1472
        %1474 = vmatprep.mubr.bf16.mxu0 %v641
        %1475 = vmatmul.mubr.bf16.gmra.mxu0 %v640
        %v1476 = vpop.f32.mrf.mxu0
        %v1477 = vadd.f32 %v1364, %v1476
        %v1478 = vpop.f32.mrf.mxu0
        %v1479 = vadd.f32 %v1366, %v1478
        %v1480 = vpop.f32.mrf.mxu0
        %v1481 = vadd.f32 %v1368, %v1480
        %v1482 = vpop.f32.mrf.mxu0
        %v1483 = vadd.f32 %v1370, %v1482
        %1484 = vmatprep.mubr.bf16.mxu0 %v647
        %1485 = vmatmul.mubr.bf16.gmra.mxu0 %v646
        %v1486 = vpop.f32.mrf.mxu0
        %v1487 = vadd.f32 %v1374, %v1486
        %v1488 = vpop.f32.mrf.mxu0
        %v1489 = vadd.f32 %v1376, %v1488
        %v1490 = vpop.f32.mrf.mxu0
        %v1491 = vadd.f32 %v1378, %v1490
        %v1492 = vpop.f32.mrf.mxu0
        %v1493 = vadd.f32 %v1380, %v1492
        %1494 = vmatprep.mubr.bf16.mxu0 %v653
        %1495 = vmatmul.mubr.bf16.gmra.mxu0 %v652
        %v1496 = vpop.f32.mrf.mxu0
        %v1497 = vadd.f32 %v1384, %v1496
        %v1498 = vpop.f32.mrf.mxu0
        %v1499 = vadd.f32 %v1386, %v1498
        %v1500 = vpop.f32.mrf.mxu0
        %v1501 = vadd.f32 %v1388, %v1500
        %v1502 = vpop.f32.mrf.mxu0
        %v1503 = vadd.f32 %v1390, %v1502
        %1504 = vmatprep.mubr.bf16.mxu0 %v659
        %1505 = vmatmul.mubr.bf16.gmra.mxu0 %v658
        %v1506 = vpop.f32.mrf.mxu0
        %v1507 = vadd.f32 %v1394, %v1506
        %v1508 = vpop.f32.mrf.mxu0
        %v1509 = vadd.f32 %v1396, %v1508
        %v1510 = vpop.f32.mrf.mxu0
        %v1511 = vadd.f32 %v1398, %v1510
        %v1512 = vpop.f32.mrf.mxu0
        %v1513 = vadd.f32 %v1400, %v1512
        %1514 = vmatprep.mubr.bf16.mxu0 %v665
        %1515 = vmatmul.mubr.bf16.gmra.mxu0 %v664
        %v1516 = vpop.f32.mrf.mxu0
        %v1517 = vadd.f32 %v1404, %v1516
        %v1518 = vpop.f32.mrf.mxu0
        %v1519 = vadd.f32 %v1406, %v1518
        %v1520 = vpop.f32.mrf.mxu0
        %v1521 = vadd.f32 %v1408, %v1520
        %v1522 = vpop.f32.mrf.mxu0
        %v1523 = vadd.f32 %v1410, %v1522
        %1524 = vmatprep.mubr.bf16.mxu0 %v671
        %1525 = vmatmul.mubr.bf16.gmra.mxu0 %v670
        %v1526 = vpop.f32.mrf.mxu0
        %v1527 = vadd.f32 %v1414, %v1526
        %v1528 = vpop.f32.mrf.mxu0
        %v1529 = vadd.f32 %v1416, %v1528
        %v1530 = vpop.f32.mrf.mxu0
        %v1531 = vadd.f32 %v1418, %v1530
        %v1532 = vpop.f32.mrf.mxu0
        %v1533 = vadd.f32 %v1420, %v1532
        %1534 = vmatprep.mubr.bf16.mxu0 %v677
        %1535 = vmatmul.mubr.bf16.gmra.mxu0 %v676
        %v1536 = vpop.f32.mrf.mxu0
        %v1537 = vadd.f32 %v1424, %v1536
        %v1538 = vpop.f32.mrf.mxu0
        %v1539 = vadd.f32 %v1426, %v1538
        %v1540 = vpop.f32.mrf.mxu0
        %v1541 = vadd.f32 %v1428, %v1540
        %v1542 = vpop.f32.mrf.mxu0
        %v1543 = vadd.f32 %v1430, %v1542
        %1544 = vdwg.mxu0
        %v1545 = vmax.f32 %v1467, 0.0
        %v1546 = vmax.f32 %v1469, 0.0
        %v1547 = vmax.f32 %v1471, 0.0
        %v1548 = vmax.f32 %v1473, 0.0
        %v1549 = vmax.f32 %v1477, 0.0
        %v1550 = vmax.f32 %v1479, 0.0
        %v1551 = vmax.f32 %v1481, 0.0
        %v1552 = vmax.f32 %v1483, 0.0
        %v1553 = vmax.f32 %v1487, 0.0
        %v1554 = vmax.f32 %v1489, 0.0
        %v1555 = vmax.f32 %v1491, 0.0
        %v1556 = vmax.f32 %v1493, 0.0
        %v1557 = vmax.f32 %v1497, 0.0
        %v1558 = vmax.f32 %v1499, 0.0
        %v1559 = vmax.f32 %v1501, 0.0
        %v1560 = vmax.f32 %v1503, 0.0
        %v1561 = vmax.f32 %v1507, 0.0
        %v1562 = vmax.f32 %v1509, 0.0
        %v1563 = vmax.f32 %v1511, 0.0
        %v1564 = vmax.f32 %v1513, 0.0
        %v1565 = vmax.f32 %v1517, 0.0
        %v1566 = vmax.f32 %v1519, 0.0
        %v1567 = vmax.f32 %v1521, 0.0
        %v1568 = vmax.f32 %v1523, 0.0
        %v1569 = vmax.f32 %v1527, 0.0
        %v1570 = vmax.f32 %v1529, 0.0
        %v1571 = vmax.f32 %v1531, 0.0
        %v1572 = vmax.f32 %v1533, 0.0
        %v1573 = vmax.f32 %v1537, 0.0
        %v1574 = vmax.f32 %v1539, 0.0
        %v1575 = vmax.f32 %v1541, 0.0
        %v1576 = vmax.f32 %v1543, 0.0
        %v1577 = vpack.c.bf16 %v1547, %v1545
        %v1578 = vpack.c.bf16 %v1548, %v1546
        %v1579 = vpack.c.bf16 %v1551, %v1549
        %v1580 = vpack.c.bf16 %v1552, %v1550
        %v1581 = vpack.c.bf16 %v1555, %v1553
        %v1582 = vpack.c.bf16 %v1556, %v1554
        %v1583 = vpack.c.bf16 %v1559, %v1557
        %v1584 = vpack.c.bf16 %v1560, %v1558
        %v1585 = vpack.c.bf16 %v1563, %v1561
        %v1586 = vpack.c.bf16 %v1564, %v1562
        %v1587 = vpack.c.bf16 %v1567, %v1565
        %v1588 = vpack.c.bf16 %v1568, %v1566
        %v1589 = vpack.c.bf16 %v1571, %v1569
        %v1590 = vpack.c.bf16 %v1572, %v1570
        %v1591 = vpack.c.bf16 %v1575, %v1573
        %v1592 = vpack.c.bf16 %v1576, %v1574
        %v1593 = vld [vmem:[#allocation8] sm:$0xf]
        %v1594 = vld [vmem:[#allocation8 + $0x4] sm:$0xf]
        %v1595 = vld [vmem:[#allocation8 + $0x8] sm:$0xf]
        %v1596 = vld [vmem:[#allocation8 + $0xc] sm:$0xf]
        %v1597 = vld [vmem:[#allocation8 + $0x10] sm:$0xf]
        %v1598 = vld [vmem:[#allocation8 + $0x14] sm:$0xf]
        %v1599 = vld [vmem:[#allocation8 + $0x18] sm:$0xf]
        %v1600 = vld [vmem:[#allocation8 + $0x1c] sm:$0xf]
        %v1601 = vld [vmem:[#allocation8 + $0x20] sm:$0xf]
        %v1602 = vld [vmem:[#allocation8 + $0x24] sm:$0xf]
        %v1603 = vld [vmem:[#allocation8 + $0x28] sm:$0xf]
        %v1604 = vld [vmem:[#allocation8 + $0x2c] sm:$0xf]
        %v1605 = vld [vmem:[#allocation8 + $0x30] sm:$0xf]
        %v1606 = vld [vmem:[#allocation8 + $0x34] sm:$0xf]
        %v1607 = vld [vmem:[#allocation8 + $0x38] sm:$0xf]
        %v1608 = vld [vmem:[#allocation8 + $0x3c] sm:$0xf]
        %v1609 = vld [vmem:[#allocation8 + $0x40] sm:$0xf]
        %v1610 = vld [vmem:[#allocation8 + $0x44] sm:$0xf]
        %v1611 = vld [vmem:[#allocation8 + $0x48] sm:$0xf]
        %v1612 = vld [vmem:[#allocation8 + $0x4c] sm:$0xf]
        %v1613 = vld [vmem:[#allocation8 + $0x50] sm:$0xf]
        %v1614 = vld [vmem:[#allocation8 + $0x54] sm:$0xf]
        %v1615 = vld [vmem:[#allocation8 + $0x58] sm:$0xf]
        %v1616 = vld [vmem:[#allocation8 + $0x5c] sm:$0xf]
        %v1617 = vld [vmem:[#allocation8 + $0x60] sm:$0xf]
        %v1618 = vld [vmem:[#allocation8 + $0x64] sm:$0xf]
        %v1619 = vld [vmem:[#allocation8 + $0x68] sm:$0xf]
        %v1620 = vld [vmem:[#allocation8 + $0x6c] sm:$0xf]
        %v1621 = vld [vmem:[#allocation8 + $0x70] sm:$0xf]
        %v1622 = vld [vmem:[#allocation8 + $0x74] sm:$0xf]
        %v1623 = vld [vmem:[#allocation8 + $0x78] sm:$0xf]
        %v1624 = vld [vmem:[#allocation8 + $0x7c] sm:$0xf]
        %v1625 = vld [vmem:[%s4] sm:$0x1]
        %v1627 = vlaneseq
        %v1628 = vshrl.u32 %v1627, 7
        %v1629 = vsub.s32 0, %v1628
        %v1630 = vrot.slane %v1625, %v1629
        %v1664 = vunpack.c.l.b16 %v1593
        %v1665 = vunpack.c.l.b16 %v1594
        %v1666 = vunpack.c.l.b16 %v1595
        %v1667 = vunpack.c.l.b16 %v1596
        %v1668 = vunpack.c.l.b16 %v1597
        %v1669 = vunpack.c.l.b16 %v1598
        %v1670 = vunpack.c.l.b16 %v1599
        %v1671 = vunpack.c.l.b16 %v1600
        %v1672 = vunpack.c.l.b16 %v1601
        %v1673 = vunpack.c.l.b16 %v1602
        %v1674 = vunpack.c.l.b16 %v1603
        %v1675 = vunpack.c.l.b16 %v1604
        %v1676 = vunpack.c.l.b16 %v1605
        %v1677 = vunpack.c.l.b16 %v1606
        %v1678 = vunpack.c.l.b16 %v1607
        %v1679 = vunpack.c.l.b16 %v1608
        %v1680 = vunpack.c.l.b16 %v1609
        %v1681 = vunpack.c.l.b16 %v1610
        %v1682 = vunpack.c.l.b16 %v1611
        %v1683 = vunpack.c.l.b16 %v1612
        %v1684 = vunpack.c.l.b16 %v1613
        %v1685 = vunpack.c.l.b16 %v1614
        %v1686 = vunpack.c.l.b16 %v1615
        %v1687 = vunpack.c.l.b16 %v1616
        %v1688 = vunpack.c.l.b16 %v1617
        %v1689 = vunpack.c.l.b16 %v1618
        %v1690 = vunpack.c.l.b16 %v1619
        %v1691 = vunpack.c.l.b16 %v1620
        %v1692 = vunpack.c.l.b16 %v1621
        %v1693 = vunpack.c.l.b16 %v1622
        %v1694 = vunpack.c.l.b16 %v1623
        %v1695 = vunpack.c.l.b16 %v1624
        %v1696 = vpack.c.b16 %v1665, %v1664
        %v1697 = vpack.c.b16 %v1667, %v1666
        %v1698 = vpack.c.b16 %v1669, %v1668
        %v1699 = vpack.c.b16 %v1671, %v1670
        %v1700 = vpack.c.b16 %v1673, %v1672
        %v1701 = vpack.c.b16 %v1675, %v1674
        %v1702 = vpack.c.b16 %v1677, %v1676
        %v1703 = vpack.c.b16 %v1679, %v1678
        %v1704 = vpack.c.b16 %v1681, %v1680
        %v1705 = vpack.c.b16 %v1683, %v1682
        %v1706 = vpack.c.b16 %v1685, %v1684
        %v1707 = vpack.c.b16 %v1687, %v1686
        %v1708 = vpack.c.b16 %v1689, %v1688
        %v1709 = vpack.c.b16 %v1691, %v1690
        %v1710 = vpack.c.b16 %v1693, %v1692
        %v1711 = vpack.c.b16 %v1695, %v1694
        %1728 = vmatprep.subr.bf16.mxu0 0
        %1729 = vmatpush1.bf16.msra.mxu0 %v1703
        %1730 = vmatprep.subr.bf16.mxu0 0
        %1731 = vmatpush1.bf16.msra.mxu0 %v1702
        %1732 = vmatprep.subr.bf16.mxu0 0
        %1733 = vmatpush1.bf16.msra.mxu0 %v1701
        %1734 = vmatprep.subr.bf16.mxu0 0
        %1735 = vmatpush1.bf16.msra.mxu0 %v1700
        %1736 = vmatprep.subr.bf16.mxu0 0
        %1737 = vmatpush1.bf16.msra.mxu0 %v1699
        %1738 = vmatprep.subr.bf16.mxu0 0
        %1739 = vmatpush1.bf16.msra.mxu0 %v1698
        %1740 = vmatprep.subr.bf16.mxu0 0
        %1741 = vmatpush1.bf16.msra.mxu0 %v1697
        %1742 = vmatprep.subr.bf16.mxu0 0
        %1743 = vmatpush1.bf16.msra.mxu0 %v1696
        %1744 = vmatprep.subr.bf16.mxu0 0
        %1745 = vmatpush2.bf16.msra.mxu0 %v1711
        %1746 = vmatprep.subr.bf16.mxu0 0
        %1747 = vmatpush2.bf16.msra.mxu0 %v1710
        %1748 = vmatprep.subr.bf16.mxu0 0
        %1749 = vmatpush2.bf16.msra.mxu0 %v1709
        %1750 = vmatprep.subr.bf16.mxu0 0
        %1751 = vmatpush2.bf16.msra.mxu0 %v1708
        %1752 = vmatprep.subr.bf16.mxu0 0
        %1753 = vmatpush2.bf16.msra.mxu0 %v1707
        %1754 = vmatprep.subr.bf16.mxu0 0
        %1755 = vmatpush2.bf16.msra.mxu0 %v1706
        %1756 = vmatprep.subr.bf16.mxu0 0
        %1757 = vmatpush2.bf16.msra.mxu0 %v1705
        %1758 = vmatprep.subr.bf16.mxu0 0
        %1759 = vmatpush2.bf16.msra.mxu0 %v1704
        %1760 = vmatprep.mubr.bf16.mxu0 %v1578
        %1761 = vmatmul.mubr.bf16.gmra.mxu0 %v1577
        %v1762 = vpop.f32.mrf.mxu0
        %v1763 = vadd.f32 %v1630, %v1762
        %v1764 = vpop.f32.mrf.mxu0
        %v1765 = vpop.f32.mrf.mxu0
        %v1766 = vadd.f32 %v1630, %v1765
        %v1767 = vpop.f32.mrf.mxu0
        %1768 = vmatprep.mubr.bf16.mxu0 %v1580
        %1769 = vmatmul.mubr.bf16.gmra.mxu0 %v1579
        %v1770 = vpop.f32.mrf.mxu0
        %v1771 = vadd.f32 %v1630, %v1770
        %v1772 = vpop.f32.mrf.mxu0
        %v1773 = vpop.f32.mrf.mxu0
        %v1774 = vadd.f32 %v1630, %v1773
        %v1775 = vpop.f32.mrf.mxu0
        %1776 = vmatprep.mubr.bf16.mxu0 %v1582
        %1777 = vmatmul.mubr.bf16.gmra.mxu0 %v1581
        %v1778 = vpop.f32.mrf.mxu0
        %v1779 = vadd.f32 %v1630, %v1778
        %v1780 = vpop.f32.mrf.mxu0
        %v1781 = vpop.f32.mrf.mxu0
        %v1782 = vadd.f32 %v1630, %v1781
        %v1783 = vpop.f32.mrf.mxu0
        %1784 = vmatprep.mubr.bf16.mxu0 %v1584
        %1785 = vmatmul.mubr.bf16.gmra.mxu0 %v1583
        %v1786 = vpop.f32.mrf.mxu0
        %v1787 = vadd.f32 %v1630, %v1786
        %v1788 = vpop.f32.mrf.mxu0
        %v1789 = vpop.f32.mrf.mxu0
        %v1790 = vadd.f32 %v1630, %v1789
        %v1791 = vpop.f32.mrf.mxu0
        %1792 = vmatprep.mubr.bf16.mxu0 %v1586
        %1793 = vmatmul.mubr.bf16.gmra.mxu0 %v1585
        %v1794 = vpop.f32.mrf.mxu0
        %v1795 = vadd.f32 %v1630, %v1794
        %v1796 = vpop.f32.mrf.mxu0
        %v1797 = vpop.f32.mrf.mxu0
        %v1798 = vadd.f32 %v1630, %v1797
        %v1799 = vpop.f32.mrf.mxu0
        %1800 = vmatprep.mubr.bf16.mxu0 %v1588
        %1801 = vmatmul.mubr.bf16.gmra.mxu0 %v1587
        %v1802 = vpop.f32.mrf.mxu0
        %v1803 = vadd.f32 %v1630, %v1802
        %v1804 = vpop.f32.mrf.mxu0
        %v1805 = vpop.f32.mrf.mxu0
        %v1806 = vadd.f32 %v1630, %v1805
        %v1807 = vpop.f32.mrf.mxu0
        %1808 = vmatprep.mubr.bf16.mxu0 %v1590
        %1809 = vmatmul.mubr.bf16.gmra.mxu0 %v1589
        %v1810 = vpop.f32.mrf.mxu0
        %v1811 = vadd.f32 %v1630, %v1810
        %v1812 = vpop.f32.mrf.mxu0
        %v1813 = vpop.f32.mrf.mxu0
        %v1814 = vadd.f32 %v1630, %v1813
        %v1815 = vpop.f32.mrf.mxu0
        %1816 = vmatprep.mubr.bf16.mxu0 %v1592
        %1817 = vmatmul.mubr.bf16.gmra.mxu0 %v1591
        %v1818 = vpop.f32.mrf.mxu0
        %v1819 = vadd.f32 %v1630, %v1818
        %v1820 = vpop.f32.mrf.mxu0
        %v1821 = vpop.f32.mrf.mxu0
        %v1822 = vadd.f32 %v1630, %v1821
        %v1823 = vpop.f32.mrf.mxu0
        %1824 = vdwg.mxu0
        %v1825 = vmax.f32 %v1763, 0.0
        %v1826 = vmax.f32 %v1766, 0.0
        %v1827 = vmax.f32 %v1771, 0.0
        %v1828 = vmax.f32 %v1774, 0.0
        %v1829 = vmax.f32 %v1779, 0.0
        %v1830 = vmax.f32 %v1782, 0.0
        %v1831 = vmax.f32 %v1787, 0.0
        %v1832 = vmax.f32 %v1790, 0.0
        %v1833 = vmax.f32 %v1795, 0.0
        %v1834 = vmax.f32 %v1798, 0.0
        %v1835 = vmax.f32 %v1803, 0.0
        %v1836 = vmax.f32 %v1806, 0.0
        %v1837 = vmax.f32 %v1811, 0.0
        %v1838 = vmax.f32 %v1814, 0.0
        %v1839 = vmax.f32 %v1819, 0.0
        %v1840 = vmax.f32 %v1822, 0.0
        %v1841 = vpack.c.bf16 %v1826, %v1825
        %v1842 = vpack.c.bf16 %v1828, %v1827
        %v1843 = vpack.c.bf16 %v1830, %v1829
        %v1844 = vpack.c.bf16 %v1832, %v1831
        %v1845 = vpack.c.bf16 %v1834, %v1833
        %v1846 = vpack.c.bf16 %v1836, %v1835
        %v1847 = vpack.c.bf16 %v1838, %v1837
        %v1848 = vpack.c.bf16 %v1840, %v1839
        %v1849 = vld [vmem:[%s5] sm:$0x1]
        %v1850 = vld [vmem:[#allocation2] sm:$0x1]
        %1852 = vset.pattern.permute.xlu0 0
        %1853 = vperm.xlu0 %1852, %v1850
        %v1854 = vpop.permute.xlu0 %1853
        %v1856 = vlaneseq
        %v1857 = vshrl.u32 %v1856, 7
        %v1858 = vsub.s32 0, %v1857
        %v1859 = vrot.slane %v1854, %v1858
        %1860 = vmatprep.subr.bf16.mxu0 0
        %1861 = vmatpush1.bf16.xpose.msra.mxu0 %v1848
        %1862 = vmatprep.subr.bf16.mxu0 0
        %1863 = vmatpush1.bf16.xpose.msra.mxu0 %v1847
        %1864 = vmatprep.subr.bf16.mxu0 0
        %1865 = vmatpush1.bf16.xpose.msra.mxu0 %v1846
        %1866 = vmatprep.subr.bf16.mxu0 0
        %1867 = vmatpush1.bf16.xpose.msra.mxu0 %v1845
        %1868 = vmatprep.subr.bf16.mxu0 0
        %1869 = vmatpush1.bf16.xpose.msra.mxu0 %v1844
        %1870 = vmatprep.subr.bf16.mxu0 0
        %1871 = vmatpush1.bf16.xpose.msra.mxu0 %v1843
        %1872 = vmatprep.subr.bf16.mxu0 0
        %1873 = vmatpush1.bf16.xpose.msra.mxu0 %v1842
        %1874 = vmatprep.subr.bf16.mxu0 0
        %1875 = vmatpush1.bf16.xpose.msra.mxu0 %v1841
        %1876 = vmatprep.subr.bf16.mxu0 0
        %1877 = vmatpush2.bf16.xpose.msra.mxu0 0
        %1878 = vmatprep.subr.bf16.mxu0 0
        %1879 = vmatpush2.bf16.xpose.msra.mxu0 0
        %1880 = vmatprep.subr.bf16.mxu0 0
        %1881 = vmatpush2.bf16.xpose.msra.mxu0 0
        %1882 = vmatprep.subr.bf16.mxu0 0
        %1883 = vmatpush2.bf16.xpose.msra.mxu0 0
        %1884 = vmatprep.subr.bf16.mxu0 0
        %1885 = vmatpush2.bf16.xpose.msra.mxu0 0
        %1886 = vmatprep.subr.bf16.mxu0 0
        %1887 = vmatpush2.bf16.xpose.msra.mxu0 0
        %1888 = vmatprep.subr.bf16.mxu0 0
        %1889 = vmatpush2.bf16.xpose.msra.mxu0 0
        %1890 = vmatprep.subr.bf16.mxu0 0
        %1891 = vmatpush2.bf16.xpose.msra.mxu0 0
        %1892 = vmatprep.mubr.bf16.mxu0 0
        %1893 = vmatmul.mubr.bf16.gmra.mxu0 %v1849
        %v1894 = vpop.f32.mrf.mxu0
        %v1895 = vadd.f32 %v1859, %v1894
        %v1896 = vpop.f32.mrf.mxu0
        %v1897 = vpop.f32.mrf.mxu0
        %v1898 = vpop.f32.mrf.mxu0
        %1899 = vdwg.mxu0
        %1900 = vst [vmem:[%s327] sm:$0x1] %v1895
        %s1901 = sand.u32 %s187, 1
        %s1902 = scalar_lea.sflag [#allocation5], %s1901
        %s1903 = sand.u32 %s187, 1
        %s1904 = scalar_lea.vmem [#allocation9], %s1903
        // Predicated region
        $region61: #{tpu_custom_call.1} parent=47 // pred_check
          %p1905 = pneg %p197
        $region62: #{tpu_custom_call.1} parent=47 // pred_check_branch
          %1907 = sbr.rel (%p1905) target = $region64
        $region63: #{tpu_custom_call.1} parent=47 // pred_region
          %s1909 = ssub.s32 16, 16
          %1910 = vsyncadd %s1902, %s1909
          %s1911 = smul.addr %s27, 16
          %s1912 = scalar_lea.hbm %s7, %s1911
          %s1914 = sshll.u32 %s1904, 4
          %s1915 = int_to_ptr.vmem [resolvable:$true] %s1914
          %1917 = dma.vmem_to_hbm [thread:$0]  %s1915, 16, %s1912, %s1902
        $region64: #{tpu_custom_call.1} parent=47 // pred_fallthru
          _
      $region48: #{tpu_custom_call.1} parent=5 // pred_fallthru
        _
      %p1918 = scmp.le.s32.totalorder 2, %s22
      // Predicated region
      $region65: #{tpu_custom_call.1} parent=5 // pred_check
        %p1919 = pneg %p1918
      $region66: #{tpu_custom_call.1} parent=5 // pred_check_branch
        %1921 = sbr.rel (%p1919) target = $region68
      $region67: #{tpu_custom_call.1} parent=5 // pred_region
        %s1922 = ssub.s32 %s22, 2
        // Predicated region
        $region69: #{tpu_custom_call.1} parent=67 // pred_check
          %p1923 = pneg %p203
        $region70: #{tpu_custom_call.1} parent=67 // pred_check_branch
          %1925 = sbr.rel (%p1923) target = $region72
        $region71: #{tpu_custom_call.1} parent=67 // pred_region
          %s1926 = sand.u32 %s188, 1
          %s1927 = scalar_lea.sflag [#allocation5], %s1926
          %s1928 = sand.u32 %s188, 1
          %s1929 = scalar_lea.vmem [#allocation9], %s1928
          %1930 = dma.done %s1927, 16
        $region72: #{tpu_custom_call.1} parent=67 // pred_fallthru
          _
      $region68: #{tpu_custom_call.1} parent=5 // pred_fallthru
        _
    $region6: #{tpu_custom_call.1} parent=1 // loop_footer
      %s26 = sadd.s32 1, %s22
    $region7: #{tpu_custom_call.1} parent=1 // loop_footer_branch
      %21 = sbr.rel target = $region3
    $region8: #{tpu_custom_call.1} parent=1 // loop_exit
      _
    %1931 = vsyncpa [#allocation4], 1
    %s1932 = scalar_lea.sflag [#allocation4], 1
    %1933 = vsyncpa %s1932, 1
    %1934 = vsyncpa [#allocation7], 1
    %1935 = vsyncpa [#allocation5], 1
    %s1936 = scalar_lea.sflag [#allocation5], 1
    %1937 = vsyncpa %s1936, 1

</llo_original>
